<compile_context>
chip_gen: v5e
topology: v5e:2x2
jax: 0.10.0
libtpu: 0.0.40
codegen_flags: <defaults>
</compile_context>

<pallas_src>
import functools

import numpy as np

import jax
import jax.numpy as jnp
from jax.experimental import pallas as pl
from jax.experimental.pallas import tpu as pltpu


# -----------------------------------------------------------------------------
# Generic lane-dense matmul kernel:  out = act(A @ B)
#   A: (M, K)    resident across the grid (small: conv weights / interp matrix)
#   B: (K, TN)   streamed column tiles, TN a multiple of 128 (lane-dense)
#   out: (M, TN) dense stores (no masked vst), f32 accumulation on the MXU.
# -----------------------------------------------------------------------------
def _mm_act_kernel(a_ref, b_ref, o_ref, *, neg_slope):
    acc = jnp.dot(a_ref[...], b_ref[...], preferred_element_type=jnp.float32)
    if neg_slope is not None:                      # fused LeakyReLU epilogue
        acc = jnp.where(acc >= 0, acc, acc * jnp.float32(neg_slope))
    o_ref[...] = acc.astype(o_ref.dtype)


def _pick_tile_cols(n_total, k, m, itemsize, budget_bytes=2 * 1024 * 1024):
    """Largest multiple-of-128 divisor of n_total whose double-buffered
    (B tile + out tile) footprint stays under `budget_bytes` (v7x-safe)."""
    if n_total % 128 != 0:
        return n_total                              # full-extent block (always legal)
    per_col = 2 * (k + m) * itemsize                # x2: BlockSpec double-buffers
    cap = max(128, (budget_bytes // max(per_col, 1)) // 128 * 128)
    tn, t = 128, 128
    while t <= n_total:
        if n_total % t == 0 and t <= cap:
            tn = t
        t += 128
    return tn


def _mm_lane_dense(a, b, *, neg_slope=None):
    m, k = a.shape
    k2, n_total = b.shape
    assert k == k2
    tn = _pick_tile_cols(n_total, k, m, b.dtype.itemsize)
    grid = (n_total // tn,)
    kernel = functools.partial(_mm_act_kernel, neg_slope=neg_slope)
    return pl.pallas_call(
        kernel,
        out_shape=jax.ShapeDtypeStruct((m, n_total), a.dtype),
        grid=grid,
        in_specs=[
            pl.BlockSpec((m, k), lambda j: (0, 0)),    # A stays resident
            pl.BlockSpec((k, tn), lambda j: (0, j)),   # stream lane-dense B tiles
        ],
        out_specs=pl.BlockSpec((m, tn), lambda j: (0, j)),
        compiler_params=pltpu.CompilerParams(
            dimension_semantics=("parallel",),         # independent tiles -> 2 TCs on v7x
            vmem_limit_bytes=32 * 1024 * 1024,
        ),
    )(a, b)


# -----------------------------------------------------------------------------
# ReflectionPad2d(1) + Conv2d(k=3, s=1, p=0) as a single im2col matmul.
# -----------------------------------------------------------------------------
def _im2col_reflect_T(x_nhwc):
    """(N,H,W,C) -> (9*C+1, N*H*W): reflect-padded 3x3 patches, transposed so the
    big spatial dim is on the lane axis, plus a row of ones for the bias fold."""
    n, h, w, c = x_nhwc.shape
    xp = jnp.pad(x_nhwc, ((0, 0), (1, 1), (1, 1), (0, 0)), mode="reflect")
    taps = [xp[:, kh:kh + h, kw:kw + w, :] for kh in range(3) for kw in range(3)]
    patches = jnp.concatenate(taps, axis=-1).reshape(n * h * w, 9 * c)
    patches_t = patches.T                                    # (9C, N*H*W)
    ones = jnp.ones((1, n * h * w), patches_t.dtype)
    return jnp.concatenate([patches_t, ones], axis=0)        # (9C+1, N*H*W)


def _conv3x3_weights_T(weight_oihw, bias):
    """OIHW (Cout,Cin,3,3) + (Cout,) -> (Cout, 9*Cin+1), bias folded as last col."""
    cout, cin = weight_oihw.shape[:2]
    wm = jnp.transpose(weight_oihw, (2, 3, 1, 0)).reshape(9 * cin, cout)
    w_aug = jnp.concatenate([wm, bias.reshape(1, cout)], axis=0)   # (9Cin+1, Cout)
    return w_aug.T


def _reflect_conv3x3(x_nhwc, weight_oihw, bias, *, neg_slope=None):
    """Returns channel-major (Cout, N, H, W)."""
    n, h, w, _ = x_nhwc.shape
    cout = weight_oihw.shape[0]
    p_t = _im2col_reflect_T(x_nhwc)                          # (9Cin+1, N*H*W)
    w_t = _conv3x3_weights_T(weight_oihw, bias)              # (Cout, 9Cin+1)
    out_t = _mm_lane_dense(w_t, p_t, neg_slope=neg_slope)    # (Cout, N*H*W)
    return out_t.reshape(cout, n, h, w)


# -----------------------------------------------------------------------------
# Bicubic upsample, align_corners=True (PyTorch semantics), as two matmuls.
# -----------------------------------------------------------------------------
def _bicubic_matrix(in_size, out_size, a=-0.75):
    """(out_size, in_size) 1-D interp matrix matching
    F.interpolate(mode='bicubic', align_corners=True)."""
    def k1(x):   # |x| <= 1
        return ((a + 2.0) * x - (a + 3.0)) * x * x + 1.0
    def k2(x):   # 1 < |x| < 2
        return ((a * x - 5.0 * a) * x + 8.0 * a) * x - 4.0 * a

    m = np.zeros((out_size, in_size), dtype=np.float64)
    scale = (in_size - 1) / (out_size - 1) if out_size > 1 else 0.0
    for i in range(out_size):
        src = scale * i
        x0 = int(np.floor(src))
        t = src - x0
        coeffs = (k2(t + 1.0), k1(t), k1(1.0 - t), k2(2.0 - t))
        for tap in range(4):
            idx = min(max(x0 - 1 + tap, 0), in_size - 1)     # border clamp
            m[i, idx] += coeffs[tap]
    return jnp.asarray(m, dtype=jnp.float32)


def _bicubic_upsample(x_cnhw, out_h, out_w):
    """(C,N,H,W) -> (C,N,out_h,out_w), separable bicubic, align_corners=True."""
    c, n, h, w = x_cnhw.shape
    m_h = _bicubic_matrix(h, out_h)                          # (out_h, h)
    m_w = _bicubic_matrix(w, out_w)                          # (out_w, w)
    # W pass: contract over w, big (c*n*h) dim on the lane axis.
    xw = jnp.transpose(x_cnhw, (3, 0, 1, 2)).reshape(w, c * n * h)
    yw = _mm_lane_dense(m_w, xw)                             # (out_w, c*n*h)
    # H pass: contract over h, big (c*n*out_w) dim on the lane axis.
    xh = jnp.transpose(yw.reshape(out_w, c, n, h), (3, 1, 2, 0)).reshape(h, c * n * out_w)
    yh = _mm_lane_dense(m_h, xh)                             # (out_h, c*n*out_w)
    return jnp.transpose(yh.reshape(out_h, c, n, out_w), (1, 2, 0, 3))


# -----------------------------------------------------------------------------
# Full conv_block2 forward (NCHW in / NCHW out).
# -----------------------------------------------------------------------------
def conv_block2_forward(x_nchw, w1, b1, w2, b2, *, out_hw=(48, 48), neg_slope=0.01):
    x_nhwc = jnp.transpose(x_nchw, (0, 2, 3, 1))
    y1 = _reflect_conv3x3(x_nhwc, w1, b1)                        # (C1, N, H, W)
    y2 = _bicubic_upsample(y1, out_hw[0], out_hw[1])             # (C1, N, 48, 48)
    y2_nhwc = jnp.transpose(y2, (1, 2, 3, 0))                    # (N, 48, 48, C1)
    y3 = _reflect_conv3x3(y2_nhwc, w2, b2, neg_slope=neg_slope)  # (C2, N, 48, 48)
    return jnp.transpose(y3, (1, 0, 2, 3))                       # NCHW


if __name__ == "__main__":
    # Small shapes consistent with the module: input_size=4, output_size=8,
    # ker_size=3, stride=1; data NCHW = (2, 4, 16, 16); interpolate -> (48, 48).
    N, CIN, H, W = 2, 4, 16, 16
    COUT, K = 8, 3
    OUT_HW = (48, 48)

    key = jax.random.PRNGKey(0)
    kx, kw1, kb1, kw2, kb2 = jax.random.split(key, 5)

    x = jax.random.normal(kx, (N, CIN, H, W), dtype=jnp.float32)
    bound1 = 1.0 / (CIN * K * K) ** 0.5
    w1 = jax.random.uniform(kw1, (COUT, CIN, K, K), jnp.float32, -bound1, bound1)
    b1 = jax.random.uniform(kb1, (COUT,), jnp.float32, -bound1, bound1)
    bound2 = 1.0 / (COUT * K * K) ** 0.5
    w2 = jax.random.uniform(kw2, (COUT, COUT, K, K), jnp.float32, -bound2, bound2)
    b2 = jax.random.uniform(kb2, (COUT,), jnp.float32, -bound2, bound2)

    fwd = jax.jit(conv_block2_forward)
    out = jax.block_until_ready(fwd(x, w1, b1, w2, b2))
    assert out.shape == (N, COUT, OUT_HW[0], OUT_HW[1]), out.shape

    # Pure-JAX/XLA reference of the same forward (PyTorch semantics).
    def ref_conv(x_nchw, wgt, bias):
        xp = jnp.pad(x_nchw, ((0, 0), (0, 0), (1, 1), (1, 1)), mode="reflect")
        y = jax.lax.conv_general_dilated(
            xp, wgt, window_strides=(1, 1), padding="VALID",
            dimension_numbers=("NCHW", "OIHW", "NCHW"))
        return y + bias[None, :, None, None]

    c1 = ref_conv(x, w1, b1)
    m_h = _bicubic_matrix(H, OUT_HW[0])
    m_w = _bicubic_matrix(W, OUT_HW[1])
    up = jnp.einsum("ah,bw,nchw->ncab", m_h, m_w, c1)
    c2 = ref_conv(up, w2, b2)
    ref = jnp.where(c2 >= 0, c2, 0.01 * c2)

    max_err = float(jnp.max(jnp.abs(out - ref)))
    assert jnp.allclose(out, ref, atol=1e-4, rtol=1e-4), max_err

    print("KERNEL_OK")
</pallas_src>

<mosaic_0001>
module attributes {stable_mosaic.version = 11 : i64} {
  func.func @_mm_act_kernel(%arg0: i32, %arg1: memref<8x37xf32, #tpu.memory_space<vmem>>, %arg2: memref<37x512xf32, #tpu.memory_space<vmem>>, %arg3: memref<8x512xf32, #tpu.memory_space<vmem>>) attributes {dimension_semantics = [#tpu.dimension_semantics<parallel>], iteration_bounds = array<i64: 1>, scalar_prefetch = 0 : i64, scratch_operands = 0 : i64, tpu.core_type = #tpu.core_type<tc>, window_params = [{pipeline_mode = #tpu.pipeline_mode<synchronous>, transform_indices = @transform_0, window_bounds = array<i64: 8, 37>}, {transform_indices = @transform_1, window_bounds = array<i64: 37, 512>}, {transform_indices = @transform_2, window_bounds = array<i64: 8, 512>}]} {
    %c0 = arith.constant 0 : index
    %c0_0 = arith.constant 0 : index
    %0 = vector.load %arg1[%c0, %c0_0] : memref<8x37xf32, #tpu.memory_space<vmem>>, vector<8x37xf32>
    %c0_1 = arith.constant 0 : index
    %c0_2 = arith.constant 0 : index
    %1 = vector.load %arg2[%c0_1, %c0_2] : memref<37x512xf32, #tpu.memory_space<vmem>>, vector<37x512xf32>
    %cst = arith.constant dense<0.000000e+00> : vector<8x512xf32>
    %2 = tpu.matmul %0, %1, %cst {dimension_numbers = #tpu.dot_dimension_numbers<[1], [0], [0], [1], [0, 0, 1, 1], [], []>} : vector<8x37xf32>, vector<37x512xf32>, vector<8x512xf32> -> vector<8x512xf32>
    %c0_3 = arith.constant 0 : index
    %c0_4 = arith.constant 0 : index
    %3 = vector.load %arg3[%c0_3, %c0_4] : memref<8x512xf32, #tpu.memory_space<vmem>>, vector<8x512xf32>
    tpu.vector_store %arg3[%c0_3, %c0_4], %2 {strides = array<i32>} : memref<8x512xf32, #tpu.memory_space<vmem>>, vector<8x512xf32>,
    return
  }
  func.func @transform_0(%arg0: i32) -> (i32, i32) {
    %c0_i32 = arith.constant 0 : i32
    %c0_i32_0 = arith.constant 0 : i32
    %c0_i32_1 = arith.constant 0 : i32
    return %c0_i32, %c0_i32_0 : i32, i32
  }
  func.func @transform_1(%arg0: i32) -> (i32, i32) {
    %c0_i32 = arith.constant 0 : i32
    %c0_i32_0 = arith.constant 0 : i32
    return %c0_i32, %arg0 : i32, i32
  }
  func.func @transform_2(%arg0: i32) -> (i32, i32) {
    %c0_i32 = arith.constant 0 : i32
    %c0_i32_0 = arith.constant 0 : i32
    return %c0_i32, %arg0 : i32, i32
  }
}

module attributes {stable_mosaic.version = 11 : i64} {
  func.func @_mm_act_kernel(%arg0: i32, %arg1: memref<48x16xf32, #tpu.memory_space<vmem>>, %arg2: memref<16x256xf32, #tpu.memory_space<vmem>>, %arg3: memref<48x256xf32, #tpu.memory_space<vmem>>) attributes {dimension_semantics = [#tpu.dimension_semantics<parallel>], iteration_bounds = array<i64: 1>, scalar_prefetch = 0 : i64, scratch_operands = 0 : i64, tpu.core_type = #tpu.core_type<tc>, window_params = [{pipeline_mode = #tpu.pipeline_mode<synchronous>, transform_indices = @transform_0, window_bounds = array<i64: 48, 16>}, {transform_indices = @transform_1, window_bounds = array<i64: 16, 256>}, {transform_indices = @transform_2, window_bounds = array<i64: 48, 256>}]} {
    %c0 = arith.constant 0 : index
    %c0_0 = arith.constant 0 : index
    %0 = vector.load %arg1[%c0, %c0_0] : memref<48x16xf32, #tpu.memory_space<vmem>>, vector<48x16xf32>
    %c0_1 = arith.constant 0 : index
    %c0_2 = arith.constant 0 : index
    %1 = vector.load %arg2[%c0_1, %c0_2] : memref<16x256xf32, #tpu.memory_space<vmem>>, vector<16x256xf32>
    %cst = arith.constant dense<0.000000e+00> : vector<48x256xf32>
    %2 = tpu.matmul %0, %1, %cst {dimension_numbers = #tpu.dot_dimension_numbers<[1], [0], [0], [1], [0, 0, 1, 1], [], []>} : vector<48x16xf32>, vector<16x256xf32>, vector<48x256xf32> -> vector<48x256xf32>
    %c0_3 = arith.constant 0 : index
    %c0_4 = arith.constant 0 : index
    %3 = vector.load %arg3[%c0_3, %c0_4] : memref<48x256xf32, #tpu.memory_space<vmem>>, vector<48x256xf32>
    tpu.vector_store %arg3[%c0_3, %c0_4], %2 {strides = array<i32>} : memref<48x256xf32, #tpu.memory_space<vmem>>, vector<48x256xf32>,
    return
  }
  func.func @transform_0(%arg0: i32) -> (i32, i32) {
    %c0_i32 = arith.constant 0 : i32
    %c0_i32_0 = arith.constant 0 : i32
    %c0_i32_1 = arith.constant 0 : i32
    return %c0_i32, %c0_i32_0 : i32, i32
  }
  func.func @transform_1(%arg0: i32) -> (i32, i32) {
    %c0_i32 = arith.constant 0 : i32
    %c0_i32_0 = arith.constant 0 : i32
    return %c0_i32, %arg0 : i32, i32
  }
  func.func @transform_2(%arg0: i32) -> (i32, i32) {
    %c0_i32 = arith.constant 0 : i32
    %c0_i32_0 = arith.constant 0 : i32
    return %c0_i32, %arg0 : i32, i32
  }
}

module attributes {stable_mosaic.version = 11 : i64} {
  func.func @_mm_act_kernel(%arg0: i32, %arg1: memref<48x16xf32, #tpu.memory_space<vmem>>, %arg2: memref<16x768xf32, #tpu.memory_space<vmem>>, %arg3: memref<48x768xf32, #tpu.memory_space<vmem>>) attributes {dimension_semantics = [#tpu.dimension_semantics<parallel>], iteration_bounds = array<i64: 1>, scalar_prefetch = 0 : i64, scratch_operands = 0 : i64, tpu.core_type = #tpu.core_type<tc>, window_params = [{pipeline_mode = #tpu.pipeline_mode<synchronous>, transform_indices = @transform_0, window_bounds = array<i64: 48, 16>}, {transform_indices = @transform_1, window_bounds = array<i64: 16, 768>}, {transform_indices = @transform_2, window_bounds = array<i64: 48, 768>}]} {
    %c0 = arith.constant 0 : index
    %c0_0 = arith.constant 0 : index
    %0 = vector.load %arg1[%c0, %c0_0] : memref<48x16xf32, #tpu.memory_space<vmem>>, vector<48x16xf32>
    %c0_1 = arith.constant 0 : index
    %c0_2 = arith.constant 0 : index
    %1 = vector.load %arg2[%c0_1, %c0_2] : memref<16x768xf32, #tpu.memory_space<vmem>>, vector<16x768xf32>
    %cst = arith.constant dense<0.000000e+00> : vector<48x768xf32>
    %2 = tpu.matmul %0, %1, %cst {dimension_numbers = #tpu.dot_dimension_numbers<[1], [0], [0], [1], [0, 0, 1, 1], [], []>} : vector<48x16xf32>, vector<16x768xf32>, vector<48x768xf32> -> vector<48x768xf32>
    %c0_3 = arith.constant 0 : index
    %c0_4 = arith.constant 0 : index
    %3 = vector.load %arg3[%c0_3, %c0_4] : memref<48x768xf32, #tpu.memory_space<vmem>>, vector<48x768xf32>
    tpu.vector_store %arg3[%c0_3, %c0_4], %2 {strides = array<i32>} : memref<48x768xf32, #tpu.memory_space<vmem>>, vector<48x768xf32>,
    return
  }
  func.func @transform_0(%arg0: i32) -> (i32, i32) {
    %c0_i32 = arith.constant 0 : i32
    %c0_i32_0 = arith.constant 0 : i32
    %c0_i32_1 = arith.constant 0 : i32
    return %c0_i32, %c0_i32_0 : i32, i32
  }
  func.func @transform_1(%arg0: i32) -> (i32, i32) {
    %c0_i32 = arith.constant 0 : i32
    %c0_i32_0 = arith.constant 0 : i32
    return %c0_i32, %arg0 : i32, i32
  }
  func.func @transform_2(%arg0: i32) -> (i32, i32) {
    %c0_i32 = arith.constant 0 : i32
    %c0_i32_0 = arith.constant 0 : i32
    return %c0_i32, %arg0 : i32, i32
  }
}

module attributes {stable_mosaic.version = 11 : i64} {
  func.func @_mm_act_kernel(%arg0: i32, %arg1: memref<8x73xf32, #tpu.memory_space<vmem>>, %arg2: memref<73x2304xf32, #tpu.memory_space<vmem>>, %arg3: memref<8x2304xf32, #tpu.memory_space<vmem>>) attributes {dimension_semantics = [#tpu.dimension_semantics<parallel>], iteration_bounds = array<i64: 2>, scalar_prefetch = 0 : i64, scratch_operands = 0 : i64, tpu.core_type = #tpu.core_type<tc>, window_params = [{pipeline_mode = #tpu.pipeline_mode<synchronous>, transform_indices = @transform_0, window_bounds = array<i64: 8, 73>}, {transform_indices = @transform_1, window_bounds = array<i64: 73, 2304>}, {transform_indices = @transform_2, window_bounds = array<i64: 8, 2304>}]} {
    %c0 = arith.constant 0 : index
    %c0_0 = arith.constant 0 : index
    %0 = vector.load %arg1[%c0, %c0_0] : memref<8x73xf32, #tpu.memory_space<vmem>>, vector<8x73xf32>
    %c0_1 = arith.constant 0 : index
    %c0_2 = arith.constant 0 : index
    %1 = vector.load %arg2[%c0_1, %c0_2] : memref<73x2304xf32, #tpu.memory_space<vmem>>, vector<73x2304xf32>
    %cst = arith.constant dense<0.000000e+00> : vector<8x2304xf32>
    %2 = tpu.matmul %0, %1, %cst {dimension_numbers = #tpu.dot_dimension_numbers<[1], [0], [0], [1], [0, 0, 1, 1], [], []>} : vector<8x73xf32>, vector<73x2304xf32>, vector<8x2304xf32> -> vector<8x2304xf32>
    %cst_3 = arith.constant 0.000000e+00 : f32
    %3 = vector.broadcast %cst_3 : f32 to vector<8x2304xf32>
    %4 = arith.cmpf oge, %2, %3 : vector<8x2304xf32>
    %cst_4 = arith.constant 0.00999999977 : f32
    %5 = vector.broadcast %cst_4 : f32 to vector<8x2304xf32>
    %6 = arith.mulf %2, %5 : vector<8x2304xf32>
    %7 = arith.select %4, %2, %6 : vector<8x2304xi1>, vector<8x2304xf32>
    %c0_5 = arith.constant 0 : index
    %c0_6 = arith.constant 0 : index
    %8 = vector.load %arg3[%c0_5, %c0_6] : memref<8x2304xf32, #tpu.memory_space<vmem>>, vector<8x2304xf32>
    tpu.vector_store %arg3[%c0_5, %c0_6], %7 {strides = array<i32>} : memref<8x2304xf32, #tpu.memory_space<vmem>>, vector<8x2304xf32>,
    return
  }
  func.func @transform_0(%arg0: i32) -> (i32, i32) {
    %c0_i32 = arith.constant 0 : i32
    %c0_i32_0 = arith.constant 0 : i32
    %c0_i32_1 = arith.constant 0 : i32
    return %c0_i32, %c0_i32_0 : i32, i32
  }
  func.func @transform_1(%arg0: i32) -> (i32, i32) {
    %c0_i32 = arith.constant 0 : i32
    %c0_i32_0 = arith.constant 0 : i32
    return %c0_i32, %arg0 : i32, i32
  }
  func.func @transform_2(%arg0: i32) -> (i32, i32) {
    %c0_i32 = arith.constant 0 : i32
    %c0_i32_0 = arith.constant 0 : i32
    return %c0_i32, %arg0 : i32, i32
  }
}

</mosaic_0001>

<llo_original>
// kernel: conv_block2_forward.4
$region0: #{conv_block2_forward.4}
  #allocation0 [shape = 'u32[]', space=smem, size = 0x4, offset = 0x4, fixed_abs, tag = 'smem constant byte address 0x4 - core index']
  #allocation1 [shape = 'u32[72,128]{1,0:T(1,128)}', space=vmem, size = 0x9000, scoped, tag = 'internal scratch']
  %s0 = inlined_call_operand.vmem [shape: f32[8,37], index: 0, kind: input, shape index: {}]
  %s1 = inlined_call_operand.vmem [shape: f32[37,512], index: 1, kind: input, shape index: {}]
  %s2 = inlined_call_operand.vmem [shape: f32[8,512], index: 2, kind: output, shape index: {}]
  %s3 = sld [smem:[#allocation0]]
  $region18: #{conv_block2_forward.4} parent=0
    _
  %s5 = ssub.s32 1, %s3
  %s6 = scalar_select 0, %s5, %s3
  // Predicated region
  $region2: #{conv_block2_forward.4} parent=0 // pred_check
    _
  $region3: #{conv_block2_forward.4} parent=0 // pred_check_branch
    %8 = sbr.rel (0) target = $region5
  $region4: #{conv_block2_forward.4} parent=0 // pred_region
    _
  $region5: #{conv_block2_forward.4} parent=0 // pred_fallthru
    _
  // Predicated region
  $region6: #{conv_block2_forward.4} parent=0 // pred_check
    _
  $region7: #{conv_block2_forward.4} parent=0 // pred_check_branch
    %10 = sbr.rel (0) target = $region9
  $region8: #{conv_block2_forward.4} parent=0 // pred_region
    _
  $region9: #{conv_block2_forward.4} parent=0 // pred_fallthru
    _
  %v11 = vld [vmem:[%s0] sm:$0xff]
  %v12 = vld [vmem:[%s1] sm:$0xff]
  %v13 = vld [vmem:[%s1 + $0x8] sm:$0xff]
  %v14 = vld [vmem:[%s1 + $0x10] sm:$0xff]
  %v15 = vld [vmem:[%s1 + $0x18] sm:$0xff]
  %v16 = vld [vmem:[%s1 + $0x20] sm:$0xff]
  %v17 = vld [vmem:[%s1 + $0x28] sm:$0xff]
  %v18 = vld [vmem:[%s1 + $0x30] sm:$0xff]
  %v19 = vld [vmem:[%s1 + $0x38] sm:$0xff]
  %v20 = vld [vmem:[%s1 + $0x40] sm:$0xff]
  %v21 = vld [vmem:[%s1 + $0x48] sm:$0xff]
  %v22 = vld [vmem:[%s1 + $0x50] sm:$0xff]
  %v23 = vld [vmem:[%s1 + $0x58] sm:$0xff]
  %v24 = vld [vmem:[%s1 + $0x60] sm:$0xff]
  %v25 = vld [vmem:[%s1 + $0x68] sm:$0xff]
  %v26 = vld [vmem:[%s1 + $0x70] sm:$0xff]
  %v27 = vld [vmem:[%s1 + $0x78] sm:$0xff]
  %v28 = vld [vmem:[%s1 + $0x80] sm:$0x1f]
  %v29 = vld [vmem:[%s1 + $0x88] sm:$0x1f]
  %v30 = vld [vmem:[%s1 + $0x90] sm:$0x1f]
  %v31 = vld [vmem:[%s1 + $0x98] sm:$0x1f]
  %vm32 = vcmask 302080
  %v34 = vsel %vm32, %v11, 0
  %vm36 = vcmask 1044480
  %v38 = vsel %vm36, %v28, 0
  %v41 = vsel %vm36, %v29, 0
  %v44 = vsel %vm36, %v30, 0
  %v47 = vsel %vm36, %v31, 0
  %49 = vmatpush.msra.mxu0 0.0
  %50 = vmatpush.msra.mxu0 0.0
  %51 = vmatpush.msra.mxu0 0.0
  %52 = vmatpush.msra.mxu0 0.0
  %53 = vmatpush.msra.mxu0 0.0
  %54 = vmatpush.msra.mxu0 0.0
  %55 = vmatpush.msra.mxu0 0.0
  %56 = vmatpush.msra.mxu0 0.0
  %57 = vmatpush.msra.mxu0 0.0
  %58 = vmatpush.msra.mxu0 0.0
  %59 = vmatpush.msra.mxu0 0.0
  %60 = vmatpush.msra.mxu0 %v38
  %61 = vmatpush.msra.mxu0 %v24
  %62 = vmatpush.msra.mxu0 %v20
  %63 = vmatpush.msra.mxu0 %v16
  %64 = vmatpush.msra.mxu0 %v12
  %65 = vmatmul.f32.gmra.mxu0 %v34
  %v66 = vpop.f32.mrf.mxu0
  %v67 = vadd.f32 0.0, %v66
  %68 = vdwg.mxu0
  %69 = vmatpush.msra.mxu0 0.0
  %70 = vmatpush.msra.mxu0 0.0
  %71 = vmatpush.msra.mxu0 0.0
  %72 = vmatpush.msra.mxu0 0.0
  %73 = vmatpush.msra.mxu0 0.0
  %74 = vmatpush.msra.mxu0 0.0
  %75 = vmatpush.msra.mxu0 0.0
  %76 = vmatpush.msra.mxu0 0.0
  %77 = vmatpush.msra.mxu0 0.0
  %78 = vmatpush.msra.mxu0 0.0
  %79 = vmatpush.msra.mxu0 0.0
  %80 = vmatpush.msra.mxu0 %v41
  %81 = vmatpush.msra.mxu0 %v25
  %82 = vmatpush.msra.mxu0 %v21
  %83 = vmatpush.msra.mxu0 %v17
  %84 = vmatpush.msra.mxu0 %v13
  %85 = vmatmul.f32.gmra.mxu0 %v34
  %v86 = vpop.f32.mrf.mxu0
  %v87 = vadd.f32 0.0, %v86
  %88 = vdwg.mxu0
  %89 = vmatpush.msra.mxu0 0.0
  %90 = vmatpush.msra.mxu0 0.0
  %91 = vmatpush.msra.mxu0 0.0
  %92 = vmatpush.msra.mxu0 0.0
  %93 = vmatpush.msra.mxu0 0.0
  %94 = vmatpush.msra.mxu0 0.0
  %95 = vmatpush.msra.mxu0 0.0
  %96 = vmatpush.msra.mxu0 0.0
  %97 = vmatpush.msra.mxu0 0.0
  %98 = vmatpush.msra.mxu0 0.0
  %99 = vmatpush.msra.mxu0 0.0
  %100 = vmatpush.msra.mxu0 %v44
  %101 = vmatpush.msra.mxu0 %v26
  %102 = vmatpush.msra.mxu0 %v22
  %103 = vmatpush.msra.mxu0 %v18
  %104 = vmatpush.msra.mxu0 %v14
  %105 = vmatmul.f32.gmra.mxu0 %v34
  %v106 = vpop.f32.mrf.mxu0
  %v107 = vadd.f32 0.0, %v106
  %108 = vdwg.mxu0
  %109 = vmatpush.msra.mxu0 0.0
  %110 = vmatpush.msra.mxu0 0.0
  %111 = vmatpush.msra.mxu0 0.0
  %112 = vmatpush.msra.mxu0 0.0
  %113 = vmatpush.msra.mxu0 0.0
  %114 = vmatpush.msra.mxu0 0.0
  %115 = vmatpush.msra.mxu0 0.0
  %116 = vmatpush.msra.mxu0 0.0
  %117 = vmatpush.msra.mxu0 0.0
  %118 = vmatpush.msra.mxu0 0.0
  %119 = vmatpush.msra.mxu0 0.0
  %120 = vmatpush.msra.mxu0 %v47
  %121 = vmatpush.msra.mxu0 %v27
  %122 = vmatpush.msra.mxu0 %v23
  %123 = vmatpush.msra.mxu0 %v19
  %124 = vmatpush.msra.mxu0 %v15
  %125 = vmatmul.f32.gmra.mxu0 %v34
  %v126 = vpop.f32.mrf.mxu0
  %v127 = vadd.f32 0.0, %v126
  %128 = vdwg.mxu0
  %129 = vst [vmem:[%s2] sm:$0xff] %v67
  %130 = vst [vmem:[%s2 + $0x8] sm:$0xff] %v87
  %131 = vst [vmem:[%s2 + $0x10] sm:$0xff] %v107
  %132 = vst [vmem:[%s2 + $0x18] sm:$0xff] %v127
  // Predicated region
  $region10: #{conv_block2_forward.4} parent=0 // pred_check
    _
  $region11: #{conv_block2_forward.4} parent=0 // pred_check_branch
    %134 = sbr.rel (0) target = $region13
  $region12: #{conv_block2_forward.4} parent=0 // pred_region
    _
  $region13: #{conv_block2_forward.4} parent=0 // pred_fallthru
    _
  // Predicated region
  $region14: #{conv_block2_forward.4} parent=0 // pred_check
    _
  $region15: #{conv_block2_forward.4} parent=0 // pred_check_branch
    %136 = sbr.rel (0) target = $region17
  $region16: #{conv_block2_forward.4} parent=0 // pred_region
    _
  $region17: #{conv_block2_forward.4} parent=0 // pred_fallthru
    _

// kernel: conv_block2_forward.5
$region0: #{conv_block2_forward.5}
  #allocation0 [shape = 'u32[]', space=smem, size = 0x4, offset = 0x4, fixed_abs, tag = 'smem constant byte address 0x4 - core index']
  #allocation1 [shape = 'u32[72,128]{1,0:T(1,128)}', space=vmem, size = 0x9000, scoped, tag = 'internal scratch']
  %s0 = inlined_call_operand.vmem [shape: f32[48,16], index: 0, kind: input, shape index: {}]
  %s1 = inlined_call_operand.vmem [shape: f32[16,256], index: 1, kind: input, shape index: {}]
  %s2 = inlined_call_operand.vmem [shape: f32[48,256], index: 2, kind: output, shape index: {}]
  %s3 = sld [smem:[#allocation0]]
  $region18: #{conv_block2_forward.5} parent=0
    _
  %s5 = ssub.s32 1, %s3
  %s6 = scalar_select 0, %s5, %s3
  // Predicated region
  $region2: #{conv_block2_forward.5} parent=0 // pred_check
    _
  $region3: #{conv_block2_forward.5} parent=0 // pred_check_branch
    %8 = sbr.rel (0) target = $region5
  $region4: #{conv_block2_forward.5} parent=0 // pred_region
    _
  $region5: #{conv_block2_forward.5} parent=0 // pred_fallthru
    _
  // Predicated region
  $region6: #{conv_block2_forward.5} parent=0 // pred_check
    _
  $region7: #{conv_block2_forward.5} parent=0 // pred_check_branch
    %10 = sbr.rel (0) target = $region9
  $region8: #{conv_block2_forward.5} parent=0 // pred_region
    _
  $region9: #{conv_block2_forward.5} parent=0 // pred_fallthru
    _
  %v11 = vld [vmem:[%s0] sm:$0xff]
  %v12 = vld [vmem:[%s0 + $0x8] sm:$0xff]
  %v13 = vld [vmem:[%s0 + $0x10] sm:$0xff]
  %v14 = vld [vmem:[%s0 + $0x18] sm:$0xff]
  %v15 = vld [vmem:[%s0 + $0x20] sm:$0xff]
  %v16 = vld [vmem:[%s0 + $0x28] sm:$0xff]
  %v17 = vld [vmem:[%s1] sm:$0xff]
  %v18 = vld [vmem:[%s1 + $0x8] sm:$0xff]
  %v19 = vld [vmem:[%s1 + $0x10] sm:$0xff]
  %v20 = vld [vmem:[%s1 + $0x18] sm:$0xff]
  %vm21 = vcmask 130048
  %v23 = vsel %vm21, %v11, 0
  %v26 = vsel %vm21, %v12, 0
  %v29 = vsel %vm21, %v13, 0
  %v32 = vsel %vm21, %v14, 0
  %v35 = vsel %vm21, %v15, 0
  %v38 = vsel %vm21, %v16, 0
  %40 = vmatpush.msra.mxu0 0.0
  %41 = vmatpush.msra.mxu0 0.0
  %42 = vmatpush.msra.mxu0 0.0
  %43 = vmatpush.msra.mxu0 0.0
  %44 = vmatpush.msra.mxu0 0.0
  %45 = vmatpush.msra.mxu0 0.0
  %46 = vmatpush.msra.mxu0 0.0
  %47 = vmatpush.msra.mxu0 0.0
  %48 = vmatpush.msra.mxu0 0.0
  %49 = vmatpush.msra.mxu0 0.0
  %50 = vmatpush.msra.mxu0 0.0
  %51 = vmatpush.msra.mxu0 0.0
  %52 = vmatpush.msra.mxu0 0.0
  %53 = vmatpush.msra.mxu0 0.0
  %54 = vmatpush.msra.mxu0 %v19
  %55 = vmatpush.msra.mxu0 %v17
  %56 = vmatmul.f32.gmra.mxu0 %v23
  %v57 = vpop.f32.mrf.mxu0
  %v58 = vadd.f32 0.0, %v57
  %59 = vmatmul.f32.gmra.mxu0 %v26
  %v60 = vpop.f32.mrf.mxu0
  %v61 = vadd.f32 0.0, %v60
  %62 = vmatmul.f32.gmra.mxu0 %v29
  %v63 = vpop.f32.mrf.mxu0
  %v64 = vadd.f32 0.0, %v63
  %65 = vmatmul.f32.gmra.mxu0 %v32
  %v66 = vpop.f32.mrf.mxu0
  %v67 = vadd.f32 0.0, %v66
  %68 = vmatmul.f32.gmra.mxu0 %v35
  %v69 = vpop.f32.mrf.mxu0
  %v70 = vadd.f32 0.0, %v69
  %71 = vmatmul.f32.gmra.mxu0 %v38
  %v72 = vpop.f32.mrf.mxu0
  %v73 = vadd.f32 0.0, %v72
  %74 = vdwg.mxu0
  %75 = vmatpush.msra.mxu0 0.0
  %76 = vmatpush.msra.mxu0 0.0
  %77 = vmatpush.msra.mxu0 0.0
  %78 = vmatpush.msra.mxu0 0.0
  %79 = vmatpush.msra.mxu0 0.0
  %80 = vmatpush.msra.mxu0 0.0
  %81 = vmatpush.msra.mxu0 0.0
  %82 = vmatpush.msra.mxu0 0.0
  %83 = vmatpush.msra.mxu0 0.0
  %84 = vmatpush.msra.mxu0 0.0
  %85 = vmatpush.msra.mxu0 0.0
  %86 = vmatpush.msra.mxu0 0.0
  %87 = vmatpush.msra.mxu0 0.0
  %88 = vmatpush.msra.mxu0 0.0
  %89 = vmatpush.msra.mxu0 %v20
  %90 = vmatpush.msra.mxu0 %v18
  %91 = vmatmul.f32.gmra.mxu0 %v23
  %v92 = vpop.f32.mrf.mxu0
  %v93 = vadd.f32 0.0, %v92
  %94 = vmatmul.f32.gmra.mxu0 %v26
  %v95 = vpop.f32.mrf.mxu0
  %v96 = vadd.f32 0.0, %v95
  %97 = vmatmul.f32.gmra.mxu0 %v29
  %v98 = vpop.f32.mrf.mxu0
  %v99 = vadd.f32 0.0, %v98
  %100 = vmatmul.f32.gmra.mxu0 %v32
  %v101 = vpop.f32.mrf.mxu0
  %v102 = vadd.f32 0.0, %v101
  %103 = vmatmul.f32.gmra.mxu0 %v35
  %v104 = vpop.f32.mrf.mxu0
  %v105 = vadd.f32 0.0, %v104
  %106 = vmatmul.f32.gmra.mxu0 %v38
  %v107 = vpop.f32.mrf.mxu0
  %v108 = vadd.f32 0.0, %v107
  %109 = vdwg.mxu0
  %110 = vst [vmem:[%s2] sm:$0xff] %v58
  %111 = vst [vmem:[%s2 + $0x8] sm:$0xff] %v93
  %112 = vst [vmem:[%s2 + $0x10] sm:$0xff] %v61
  %113 = vst [vmem:[%s2 + $0x18] sm:$0xff] %v96
  %114 = vst [vmem:[%s2 + $0x20] sm:$0xff] %v64
  %115 = vst [vmem:[%s2 + $0x28] sm:$0xff] %v99
  %116 = vst [vmem:[%s2 + $0x30] sm:$0xff] %v67
  %117 = vst [vmem:[%s2 + $0x38] sm:$0xff] %v102
  %118 = vst [vmem:[%s2 + $0x40] sm:$0xff] %v70
  %119 = vst [vmem:[%s2 + $0x48] sm:$0xff] %v105
  %120 = vst [vmem:[%s2 + $0x50] sm:$0xff] %v73
  %121 = vst [vmem:[%s2 + $0x58] sm:$0xff] %v108
  // Predicated region
  $region10: #{conv_block2_forward.5} parent=0 // pred_check
    _
  $region11: #{conv_block2_forward.5} parent=0 // pred_check_branch
    %123 = sbr.rel (0) target = $region13
  $region12: #{conv_block2_forward.5} parent=0 // pred_region
    _
  $region13: #{conv_block2_forward.5} parent=0 // pred_fallthru
    _
  // Predicated region
  $region14: #{conv_block2_forward.5} parent=0 // pred_check
    _
  $region15: #{conv_block2_forward.5} parent=0 // pred_check_branch
    %125 = sbr.rel (0) target = $region17
  $region16: #{conv_block2_forward.5} parent=0 // pred_region
    _
  $region17: #{conv_block2_forward.5} parent=0 // pred_fallthru
    _

// kernel: conv_block2_forward.6
$region0: #{conv_block2_forward.6}
  #allocation0 [shape = 'u32[]', space=smem, size = 0x4, offset = 0x4, fixed_abs, tag = 'smem constant byte address 0x4 - core index']
  #allocation1 [shape = 'u32[72,128]{1,0:T(1,128)}', space=vmem, size = 0x9000, scoped, tag = 'internal scratch']
  %s0 = inlined_call_operand.vmem [shape: f32[48,16], index: 0, kind: input, shape index: {}]
  %s1 = inlined_call_operand.vmem [shape: f32[16,768], index: 1, kind: input, shape index: {}]
  %s2 = inlined_call_operand.vmem [shape: f32[48,768], index: 2, kind: output, shape index: {}]
  %s3 = sld [smem:[#allocation0]]
  $region18: #{conv_block2_forward.6} parent=0
    _
  %s5 = ssub.s32 1, %s3
  %s6 = scalar_select 0, %s5, %s3
  // Predicated region
  $region2: #{conv_block2_forward.6} parent=0 // pred_check
    _
  $region3: #{conv_block2_forward.6} parent=0 // pred_check_branch
    %8 = sbr.rel (0) target = $region5
  $region4: #{conv_block2_forward.6} parent=0 // pred_region
    _
  $region5: #{conv_block2_forward.6} parent=0 // pred_fallthru
    _
  // Predicated region
  $region6: #{conv_block2_forward.6} parent=0 // pred_check
    _
  $region7: #{conv_block2_forward.6} parent=0 // pred_check_branch
    %10 = sbr.rel (0) target = $region9
  $region8: #{conv_block2_forward.6} parent=0 // pred_region
    _
  $region9: #{conv_block2_forward.6} parent=0 // pred_fallthru
    _
  %v11 = vld [vmem:[%s0] sm:$0xff]
  %v12 = vld [vmem:[%s0 + $0x8] sm:$0xff]
  %v13 = vld [vmem:[%s0 + $0x10] sm:$0xff]
  %v14 = vld [vmem:[%s0 + $0x18] sm:$0xff]
  %v15 = vld [vmem:[%s0 + $0x20] sm:$0xff]
  %v16 = vld [vmem:[%s0 + $0x28] sm:$0xff]
  %v17 = vld [vmem:[%s1] sm:$0xff]
  %v18 = vld [vmem:[%s1 + $0x8] sm:$0xff]
  %v19 = vld [vmem:[%s1 + $0x10] sm:$0xff]
  %v20 = vld [vmem:[%s1 + $0x18] sm:$0xff]
  %v21 = vld [vmem:[%s1 + $0x20] sm:$0xff]
  %v22 = vld [vmem:[%s1 + $0x28] sm:$0xff]
  %v23 = vld [vmem:[%s1 + $0x30] sm:$0xff]
  %v24 = vld [vmem:[%s1 + $0x38] sm:$0xff]
  %v25 = vld [vmem:[%s1 + $0x40] sm:$0xff]
  %v26 = vld [vmem:[%s1 + $0x48] sm:$0xff]
  %v27 = vld [vmem:[%s1 + $0x50] sm:$0xff]
  %v28 = vld [vmem:[%s1 + $0x58] sm:$0xff]
  %vm29 = vcmask 130048
  %v31 = vsel %vm29, %v11, 0
  %v34 = vsel %vm29, %v12, 0
  %v37 = vsel %vm29, %v13, 0
  %v40 = vsel %vm29, %v14, 0
  %v43 = vsel %vm29, %v15, 0
  %v46 = vsel %vm29, %v16, 0
  %48 = vmatpush.msra.mxu0 0.0
  %49 = vmatpush.msra.mxu0 0.0
  %50 = vmatpush.msra.mxu0 0.0
  %51 = vmatpush.msra.mxu0 0.0
  %52 = vmatpush.msra.mxu0 0.0
  %53 = vmatpush.msra.mxu0 0.0
  %54 = vmatpush.msra.mxu0 0.0
  %55 = vmatpush.msra.mxu0 0.0
  %56 = vmatpush.msra.mxu0 0.0
  %57 = vmatpush.msra.mxu0 0.0
  %58 = vmatpush.msra.mxu0 0.0
  %59 = vmatpush.msra.mxu0 0.0
  %60 = vmatpush.msra.mxu0 0.0
  %61 = vmatpush.msra.mxu0 0.0
  %62 = vmatpush.msra.mxu0 %v23
  %63 = vmatpush.msra.mxu0 %v17
  %64 = vmatmul.f32.gmra.mxu0 %v31
  %v65 = vpop.f32.mrf.mxu0
  %v66 = vadd.f32 0.0, %v65
  %67 = vmatmul.f32.gmra.mxu0 %v34
  %v68 = vpop.f32.mrf.mxu0
  %v69 = vadd.f32 0.0, %v68
  %70 = vmatmul.f32.gmra.mxu0 %v37
  %v71 = vpop.f32.mrf.mxu0
  %v72 = vadd.f32 0.0, %v71
  %73 = vmatmul.f32.gmra.mxu0 %v40
  %v74 = vpop.f32.mrf.mxu0
  %v75 = vadd.f32 0.0, %v74
  %76 = vmatmul.f32.gmra.mxu0 %v43
  %v77 = vpop.f32.mrf.mxu0
  %v78 = vadd.f32 0.0, %v77
  %79 = vmatmul.f32.gmra.mxu0 %v46
  %v80 = vpop.f32.mrf.mxu0
  %v81 = vadd.f32 0.0, %v80
  %82 = vdwg.mxu0
  %83 = vmatpush.msra.mxu0 0.0
  %84 = vmatpush.msra.mxu0 0.0
  %85 = vmatpush.msra.mxu0 0.0
  %86 = vmatpush.msra.mxu0 0.0
  %87 = vmatpush.msra.mxu0 0.0
  %88 = vmatpush.msra.mxu0 0.0
  %89 = vmatpush.msra.mxu0 0.0
  %90 = vmatpush.msra.mxu0 0.0
  %91 = vmatpush.msra.mxu0 0.0
  %92 = vmatpush.msra.mxu0 0.0
  %93 = vmatpush.msra.mxu0 0.0
  %94 = vmatpush.msra.mxu0 0.0
  %95 = vmatpush.msra.mxu0 0.0
  %96 = vmatpush.msra.mxu0 0.0
  %97 = vmatpush.msra.mxu0 %v24
  %98 = vmatpush.msra.mxu0 %v18
  %99 = vmatmul.f32.gmra.mxu0 %v31
  %v100 = vpop.f32.mrf.mxu0
  %v101 = vadd.f32 0.0, %v100
  %102 = vmatmul.f32.gmra.mxu0 %v34
  %v103 = vpop.f32.mrf.mxu0
  %v104 = vadd.f32 0.0, %v103
  %105 = vmatmul.f32.gmra.mxu0 %v37
  %v106 = vpop.f32.mrf.mxu0
  %v107 = vadd.f32 0.0, %v106
  %108 = vmatmul.f32.gmra.mxu0 %v40
  %v109 = vpop.f32.mrf.mxu0
  %v110 = vadd.f32 0.0, %v109
  %111 = vmatmul.f32.gmra.mxu0 %v43
  %v112 = vpop.f32.mrf.mxu0
  %v113 = vadd.f32 0.0, %v112
  %114 = vmatmul.f32.gmra.mxu0 %v46
  %v115 = vpop.f32.mrf.mxu0
  %v116 = vadd.f32 0.0, %v115
  %117 = vdwg.mxu0
  %118 = vmatpush.msra.mxu0 0.0
  %119 = vmatpush.msra.mxu0 0.0
  %120 = vmatpush.msra.mxu0 0.0
  %121 = vmatpush.msra.mxu0 0.0
  %122 = vmatpush.msra.mxu0 0.0
  %123 = vmatpush.msra.mxu0 0.0
  %124 = vmatpush.msra.mxu0 0.0
  %125 = vmatpush.msra.mxu0 0.0
  %126 = vmatpush.msra.mxu0 0.0
  %127 = vmatpush.msra.mxu0 0.0
  %128 = vmatpush.msra.mxu0 0.0
  %129 = vmatpush.msra.mxu0 0.0
  %130 = vmatpush.msra.mxu0 0.0
  %131 = vmatpush.msra.mxu0 0.0
  %132 = vmatpush.msra.mxu0 %v25
  %133 = vmatpush.msra.mxu0 %v19
  %134 = vmatmul.f32.gmra.mxu0 %v31
  %v135 = vpop.f32.mrf.mxu0
  %v136 = vadd.f32 0.0, %v135
  %137 = vmatmul.f32.gmra.mxu0 %v34
  %v138 = vpop.f32.mrf.mxu0
  %v139 = vadd.f32 0.0, %v138
  %140 = vmatmul.f32.gmra.mxu0 %v37
  %v141 = vpop.f32.mrf.mxu0
  %v142 = vadd.f32 0.0, %v141
  %143 = vmatmul.f32.gmra.mxu0 %v40
  %v144 = vpop.f32.mrf.mxu0
  %v145 = vadd.f32 0.0, %v144
  %146 = vmatmul.f32.gmra.mxu0 %v43
  %v147 = vpop.f32.mrf.mxu0
  %v148 = vadd.f32 0.0, %v147
  %149 = vmatmul.f32.gmra.mxu0 %v46
  %v150 = vpop.f32.mrf.mxu0
  %v151 = vadd.f32 0.0, %v150
  %152 = vdwg.mxu0
  %153 = vmatpush.msra.mxu0 0.0
  %154 = vmatpush.msra.mxu0 0.0
  %155 = vmatpush.msra.mxu0 0.0
  %156 = vmatpush.msra.mxu0 0.0
  %157 = vmatpush.msra.mxu0 0.0
  %158 = vmatpush.msra.mxu0 0.0
  %159 = vmatpush.msra.mxu0 0.0
  %160 = vmatpush.msra.mxu0 0.0
  %161 = vmatpush.msra.mxu0 0.0
  %162 = vmatpush.msra.mxu0 0.0
  %163 = vmatpush.msra.mxu0 0.0
  %164 = vmatpush.msra.mxu0 0.0
  %165 = vmatpush.msra.mxu0 0.0
  %166 = vmatpush.msra.mxu0 0.0
  %167 = vmatpush.msra.mxu0 %v26
  %168 = vmatpush.msra.mxu0 %v20
  %169 = vmatmul.f32.gmra.mxu0 %v31
  %v170 = vpop.f32.mrf.mxu0
  %v171 = vadd.f32 0.0, %v170
  %172 = vmatmul.f32.gmra.mxu0 %v34
  %v173 = vpop.f32.mrf.mxu0
  %v174 = vadd.f32 0.0, %v173
  %175 = vmatmul.f32.gmra.mxu0 %v37
  %v176 = vpop.f32.mrf.mxu0
  %v177 = vadd.f32 0.0, %v176
  %178 = vmatmul.f32.gmra.mxu0 %v40
  %v179 = vpop.f32.mrf.mxu0
  %v180 = vadd.f32 0.0, %v179
  %181 = vmatmul.f32.gmra.mxu0 %v43
  %v182 = vpop.f32.mrf.mxu0
  %v183 = vadd.f32 0.0, %v182
  %184 = vmatmul.f32.gmra.mxu0 %v46
  %v185 = vpop.f32.mrf.mxu0
  %v186 = vadd.f32 0.0, %v185
  %187 = vdwg.mxu0
  %188 = vmatpush.msra.mxu0 0.0
  %189 = vmatpush.msra.mxu0 0.0
  %190 = vmatpush.msra.mxu0 0.0
  %191 = vmatpush.msra.mxu0 0.0
  %192 = vmatpush.msra.mxu0 0.0
  %193 = vmatpush.msra.mxu0 0.0
  %194 = vmatpush.msra.mxu0 0.0
  %195 = vmatpush.msra.mxu0 0.0
  %196 = vmatpush.msra.mxu0 0.0
  %197 = vmatpush.msra.mxu0 0.0
  %198 = vmatpush.msra.mxu0 0.0
  %199 = vmatpush.msra.mxu0 0.0
  %200 = vmatpush.msra.mxu0 0.0
  %201 = vmatpush.msra.mxu0 0.0
  %202 = vmatpush.msra.mxu0 %v27
  %203 = vmatpush.msra.mxu0 %v21
  %204 = vmatmul.f32.gmra.mxu0 %v31
  %v205 = vpop.f32.mrf.mxu0
  %v206 = vadd.f32 0.0, %v205
  %207 = vmatmul.f32.gmra.mxu0 %v34
  %v208 = vpop.f32.mrf.mxu0
  %v209 = vadd.f32 0.0, %v208
  %210 = vmatmul.f32.gmra.mxu0 %v37
  %v211 = vpop.f32.mrf.mxu0
  %v212 = vadd.f32 0.0, %v211
  %213 = vmatmul.f32.gmra.mxu0 %v40
  %v214 = vpop.f32.mrf.mxu0
  %v215 = vadd.f32 0.0, %v214
  %216 = vmatmul.f32.gmra.mxu0 %v43
  %v217 = vpop.f32.mrf.mxu0
  %v218 = vadd.f32 0.0, %v217
  %219 = vmatmul.f32.gmra.mxu0 %v46
  %v220 = vpop.f32.mrf.mxu0
  %v221 = vadd.f32 0.0, %v220
  %222 = vdwg.mxu0
  %223 = vmatpush.msra.mxu0 0.0
  %224 = vmatpush.msra.mxu0 0.0
  %225 = vmatpush.msra.mxu0 0.0
  %226 = vmatpush.msra.mxu0 0.0
  %227 = vmatpush.msra.mxu0 0.0
  %228 = vmatpush.msra.mxu0 0.0
  %229 = vmatpush.msra.mxu0 0.0
  %230 = vmatpush.msra.mxu0 0.0
  %231 = vmatpush.msra.mxu0 0.0
  %232 = vmatpush.msra.mxu0 0.0
  %233 = vmatpush.msra.mxu0 0.0
  %234 = vmatpush.msra.mxu0 0.0
  %235 = vmatpush.msra.mxu0 0.0
  %236 = vmatpush.msra.mxu0 0.0
  %237 = vmatpush.msra.mxu0 %v28
  %238 = vmatpush.msra.mxu0 %v22
  %239 = vmatmul.f32.gmra.mxu0 %v31
  %v240 = vpop.f32.mrf.mxu0
  %v241 = vadd.f32 0.0, %v240
  %242 = vmatmul.f32.gmra.mxu0 %v34
  %v243 = vpop.f32.mrf.mxu0
  %v244 = vadd.f32 0.0, %v243
  %245 = vmatmul.f32.gmra.mxu0 %v37
  %v246 = vpop.f32.mrf.mxu0
  %v247 = vadd.f32 0.0, %v246
  %248 = vmatmul.f32.gmra.mxu0 %v40
  %v249 = vpop.f32.mrf.mxu0
  %v250 = vadd.f32 0.0, %v249
  %251 = vmatmul.f32.gmra.mxu0 %v43
  %v252 = vpop.f32.mrf.mxu0
  %v253 = vadd.f32 0.0, %v252
  %254 = vmatmul.f32.gmra.mxu0 %v46
  %v255 = vpop.f32.mrf.mxu0
  %v256 = vadd.f32 0.0, %v255
  %257 = vdwg.mxu0
  %258 = vst [vmem:[%s2] sm:$0xff] %v66
  %259 = vst [vmem:[%s2 + $0x8] sm:$0xff] %v101
  %260 = vst [vmem:[%s2 + $0x10] sm:$0xff] %v136
  %261 = vst [vmem:[%s2 + $0x18] sm:$0xff] %v171
  %262 = vst [vmem:[%s2 + $0x20] sm:$0xff] %v206
  %263 = vst [vmem:[%s2 + $0x28] sm:$0xff] %v241
  %264 = vst [vmem:[%s2 + $0x30] sm:$0xff] %v69
  %265 = vst [vmem:[%s2 + $0x38] sm:$0xff] %v104
  %266 = vst [vmem:[%s2 + $0x40] sm:$0xff] %v139
  %267 = vst [vmem:[%s2 + $0x48] sm:$0xff] %v174
  %268 = vst [vmem:[%s2 + $0x50] sm:$0xff] %v209
  %269 = vst [vmem:[%s2 + $0x58] sm:$0xff] %v244
  %270 = vst [vmem:[%s2 + $0x60] sm:$0xff] %v72
  %271 = vst [vmem:[%s2 + $0x68] sm:$0xff] %v107
  %272 = vst [vmem:[%s2 + $0x70] sm:$0xff] %v142
  %273 = vst [vmem:[%s2 + $0x78] sm:$0xff] %v177
  %274 = vst [vmem:[%s2 + $0x80] sm:$0xff] %v212
  %275 = vst [vmem:[%s2 + $0x88] sm:$0xff] %v247
  %276 = vst [vmem:[%s2 + $0x90] sm:$0xff] %v75
  %277 = vst [vmem:[%s2 + $0x98] sm:$0xff] %v110
  %278 = vst [vmem:[%s2 + $0xa0] sm:$0xff] %v145
  %279 = vst [vmem:[%s2 + $0xa8] sm:$0xff] %v180
  %280 = vst [vmem:[%s2 + $0xb0] sm:$0xff] %v215
  %281 = vst [vmem:[%s2 + $0xb8] sm:$0xff] %v250
  %282 = vst [vmem:[%s2 + $0xc0] sm:$0xff] %v78
  %283 = vst [vmem:[%s2 + $0xc8] sm:$0xff] %v113
  %284 = vst [vmem:[%s2 + $0xd0] sm:$0xff] %v148
  %285 = vst [vmem:[%s2 + $0xd8] sm:$0xff] %v183
  %286 = vst [vmem:[%s2 + $0xe0] sm:$0xff] %v218
  %287 = vst [vmem:[%s2 + $0xe8] sm:$0xff] %v253
  %288 = vst [vmem:[%s2 + $0xf0] sm:$0xff] %v81
  %289 = vst [vmem:[%s2 + $0xf8] sm:$0xff] %v116
  %290 = vst [vmem:[%s2 + $0x100] sm:$0xff] %v151
  %291 = vst [vmem:[%s2 + $0x108] sm:$0xff] %v186
  %292 = vst [vmem:[%s2 + $0x110] sm:$0xff] %v221
  %293 = vst [vmem:[%s2 + $0x118] sm:$0xff] %v256
  // Predicated region
  $region10: #{conv_block2_forward.6} parent=0 // pred_check
    _
  $region11: #{conv_block2_forward.6} parent=0 // pred_check_branch
    %295 = sbr.rel (0) target = $region13
  $region12: #{conv_block2_forward.6} parent=0 // pred_region
    _
  $region13: #{conv_block2_forward.6} parent=0 // pred_fallthru
    _
  // Predicated region
  $region14: #{conv_block2_forward.6} parent=0 // pred_check
    _
  $region15: #{conv_block2_forward.6} parent=0 // pred_check_branch
    %297 = sbr.rel (0) target = $region17
  $region16: #{conv_block2_forward.6} parent=0 // pred_region
    _
  $region17: #{conv_block2_forward.6} parent=0 // pred_fallthru
    _

// kernel: conv_block2_forward.7
$region0: #{conv_block2_forward.7}
  #allocation0 [shape = 'u32[]', space=smem, size = 0x4, offset = 0x4, fixed_abs, tag = 'smem constant byte address 0x4 - core index']
  #allocation1 [shape = 'u32[72,128]{1,0:T(1,128)}', space=vmem, size = 0x9000, scoped, tag = 'internal scratch']
  %s0 = inlined_call_operand.vmem [shape: f32[8,73], index: 0, kind: input, shape index: {}]
  %s1 = inlined_call_operand.vmem [shape: f32[73,4608], index: 1, kind: input, shape index: {}]
  %s2 = inlined_call_operand.vmem [shape: f32[8,4608], index: 2, kind: output, shape index: {}]
  %s3 = sld [smem:[#allocation0]]
  $region64: #{conv_block2_forward.7} parent=0
    _
  %s5 = ssub.s32 1, %s3
  %s6 = scalar_select 0, %s5, %s3
  $region1: #{conv_block2_forward.7} parent=0
    #allocation2 [shape = 'u8[1474560]{0}', space=vmem, size = 0x168000, scoped, tag = 'input window, operand 1']
    loop: start=0, step=1, limit=4
    $region2: #{conv_block2_forward.7} parent=1 // loop_pre_header
      _
    $region3: #{conv_block2_forward.7} parent=1 // loop_header
      %s8 = sphi 0, %s12
      %p9 = scmp.ge.s32.totalorder %s8, 4
      %s16 = sphi 0, %s16
      %s18 = sphi 0, %s16
      %s19 = sphi 0, %s18
      %s33 = sphi 0, %s19
      %s39 = sphi 0, %s41
      %s42 = sphi 0, %s39
      %s43 = sphi 0, %s42
      %s59 = sphi 0, %s43
      %s65 = sphi 0, %s67
      %s68 = sphi 0, %s65
      %s69 = sphi 0, %s68
      %s85 = sphi 0, %s69
    $region4: #{conv_block2_forward.7} parent=1 // loop_header_branch
      %11 = sbr.rel (%p9) target = $region8
    $region5: #{conv_block2_forward.7} parent=1 // loop_body
      %s13 = ssub.s32 %s8, 1
      %s14 = ssub.s32 %s8, 2
      %s15 = sadd.s32 %s8, 1
      %s17 = sadd.s32 %s16, 1
      %p20 = scmp.eq.s32.totalorder %s8, 1
      %p21 = scmp.ne.s32.totalorder %s16, %s18
      %p22 = scmp.eq.s32.totalorder %s8, 0
      %p23 = por %p21, %p22
      %p24 = scmp.ne.s32.totalorder %s16, %s18
      %p25 = scmp.eq.s32.totalorder %s13, 1
      %p26 = por %p24, %p25
      %p27 = scmp.ne.s32.totalorder %s18, %s19
      %p28 = scmp.eq.s32.totalorder %s13, 0
      %p29 = por %p27, %p28
      %p30 = scmp.ne.s32.totalorder %s18, %s19
      %p31 = scmp.eq.s32.totalorder %s14, 1
      %p32 = por %p30, %p31
      %p34 = scmp.ne.s32.totalorder %s19, %s33
      %p35 = scmp.eq.s32.totalorder %s14, 0
      %p36 = por %p34, %p35
      %s37 = ssub.s32 %s8, %s15
      %p38 = scmp.eq.s32.totalorder %s37, 0
      %s40 = sadd.s32 %s39, 1
      %s41 = scalar_select %p38, %s39, %s40
      %p44 = pneg %p38
      %p45 = scmp.eq.s32.totalorder %s8, 1
      %p46 = por %p44, %p45
      %p47 = scmp.ne.s32.totalorder %s39, %s42
      %p48 = scmp.eq.s32.totalorder %s8, 0
      %p49 = por %p47, %p48
      %p50 = scmp.ne.s32.totalorder %s39, %s42
      %p51 = scmp.eq.s32.totalorder %s13, 1
      %p52 = por %p50, %p51
      %p53 = scmp.ne.s32.totalorder %s42, %s43
      %p54 = scmp.eq.s32.totalorder %s13, 0
      %p55 = por %p53, %p54
      %p56 = scmp.ne.s32.totalorder %s42, %s43
      %p57 = scmp.eq.s32.totalorder %s14, 1
      %p58 = por %p56, %p57
      %p60 = scmp.ne.s32.totalorder %s43, %s59
      %p61 = scmp.eq.s32.totalorder %s14, 0
      %p62 = por %p60, %p61
      %s63 = ssub.s32 %s8, %s15
      %p64 = scmp.eq.s32.totalorder %s63, 0
      %s66 = sadd.s32 %s65, 1
      %s67 = scalar_select %p64, %s65, %s66
      %p70 = pneg %p64
      %p71 = scmp.eq.s32.totalorder %s8, 1
      %p72 = por %p70, %p71
      %p73 = scmp.ne.s32.totalorder %s65, %s68
      %p74 = scmp.eq.s32.totalorder %s8, 0
      %p75 = por %p73, %p74
      %p76 = scmp.ne.s32.totalorder %s65, %s68
      %p77 = scmp.eq.s32.totalorder %s13, 1
      %p78 = por %p76, %p77
      %p79 = scmp.ne.s32.totalorder %s68, %s69
      %p80 = scmp.eq.s32.totalorder %s13, 0
      %p81 = por %p79, %p80
      %p82 = scmp.ne.s32.totalorder %s68, %s69
      %p83 = scmp.eq.s32.totalorder %s14, 1
      %p84 = por %p82, %p83
      %p86 = scmp.ne.s32.totalorder %s69, %s85
      %p87 = scmp.eq.s32.totalorder %s14, 0
      %p88 = por %p86, %p87
      %p89 = scmp.le.s32.totalorder 1, %s8
      %p90 = scmp.lt.s32.totalorder %s8, 3
      %p91 = pnand %p89, %p90
      %p92 = pneg %p91
      // Predicated region
      $region9: #{conv_block2_forward.7} parent=5 // pred_check
        _
      $region10: #{conv_block2_forward.7} parent=5 // pred_check_branch
        %94 = sbr.rel (%p91) target = $region12
      $region11: #{conv_block2_forward.7} parent=5 // pred_region
        %s95 = ssub.s32 %s8, 1
        // Predicated region
        $region13: #{conv_block2_forward.7} parent=11 // pred_check
          %p96 = pneg %p29
        $region14: #{conv_block2_forward.7} parent=11 // pred_check_branch
          %98 = sbr.rel (%p96) target = $region16
        $region15: #{conv_block2_forward.7} parent=11 // pred_region
          _
        $region16: #{conv_block2_forward.7} parent=11 // pred_fallthru
          _
      $region12: #{conv_block2_forward.7} parent=5 // pred_fallthru
        _
      %p99 = scmp.lt.s32.totalorder %s8, 2
      // Predicated region
      $region17: #{conv_block2_forward.7} parent=5 // pred_check
        %p100 = pneg %p99
      $region18: #{conv_block2_forward.7} parent=5 // pred_check_branch
        %102 = sbr.rel (%p100) target = $region20
      $region19: #{conv_block2_forward.7} parent=5 // pred_region
        // Predicated region
        $region21: #{conv_block2_forward.7} parent=19 // pred_check
          %p103 = pneg %p49
        $region22: #{conv_block2_forward.7} parent=19 // pred_check_branch
          %105 = sbr.rel (%p103) target = $region24
        $region23: #{conv_block2_forward.7} parent=19 // pred_region
          %s106 = sand.u32 %s39, 1
          %s107 = sand.u32 %s39, 1
          %s108 = smul.addr %s107, 1440
          %s109 = scalar_lea.vmem [#allocation2], %s108
          %s110 = smul.u32 18, %s8
          %s111 = smul.addr %s110, 8
          %s112 = scalar_lea.vmem %s1, %s111
          // Predicated region
          $region25: #{conv_block2_forward.7} parent=23 // pred_check
            _
          $region26: #{conv_block2_forward.7} parent=23 // pred_check_branch
            %114 = sbr.rel (0) target = $region28
          $region27: #{conv_block2_forward.7} parent=23 // pred_region
            // Predicated region
            $region29: #{conv_block2_forward.7} parent=27 // pred_check
              _
            $region30: #{conv_block2_forward.7} parent=27 // pred_check_branch
              %116 = sbr.rel (0) target = $region32
            $region31: #{conv_block2_forward.7} parent=27 // pred_region
              loop: start=0, step=1, limit=1
              $region33: #{conv_block2_forward.7} parent=31 // loop_pre_header
                _
              $region34: #{conv_block2_forward.7} parent=31 // loop_header
                %s118 = sphi 0, %s122
                %p119 = scmp.ge.s32.totalorder %s118, 1
                %s123 = sphi %s112, %s112
                %s124 = sphi %s109, %s109
              $region35: #{conv_block2_forward.7} parent=31 // loop_header_branch
                %121 = sbr.rel (%p119) target = $region39
              $region36: #{conv_block2_forward.7} parent=31 // loop_body
                %v125 = vld [vmem:[%s123] sm:$0xff]
                %126 = vst [vmem:[%s124] sm:$0xff] %v125
                %v127 = vld [vmem:[%s123 + $0x8] sm:$0xff]
                %128 = vst [vmem:[%s124 + $0x8] sm:$0xff] %v127
                %v129 = vld [vmem:[%s123 + $0x10] sm:$0xff]
                %130 = vst [vmem:[%s124 + $0x10] sm:$0xff] %v129
                %v131 = vld [vmem:[%s123 + $0x18] sm:$0xff]
                %132 = vst [vmem:[%s124 + $0x18] sm:$0xff] %v131
                %v133 = vld [vmem:[%s123 + $0x20] sm:$0xff]
                %134 = vst [vmem:[%s124 + $0x20] sm:$0xff] %v133
                %v135 = vld [vmem:[%s123 + $0x28] sm:$0xff]
                %136 = vst [vmem:[%s124 + $0x28] sm:$0xff] %v135
                %v137 = vld [vmem:[%s123 + $0x30] sm:$0xff]
                %138 = vst [vmem:[%s124 + $0x30] sm:$0xff] %v137
                %v139 = vld [vmem:[%s123 + $0x38] sm:$0xff]
                %140 = vst [vmem:[%s124 + $0x38] sm:$0xff] %v139
                %v141 = vld [vmem:[%s123 + $0x40] sm:$0xff]
                %142 = vst [vmem:[%s124 + $0x40] sm:$0xff] %v141
                %v143 = vld [vmem:[%s123 + $0x48] sm:$0xff]
                %144 = vst [vmem:[%s124 + $0x48] sm:$0xff] %v143
                %v145 = vld [vmem:[%s123 + $0x50] sm:$0xff]
                %146 = vst [vmem:[%s124 + $0x50] sm:$0xff] %v145
                %v147 = vld [vmem:[%s123 + $0x58] sm:$0xff]
                %148 = vst [vmem:[%s124 + $0x58] sm:$0xff] %v147
                %v149 = vld [vmem:[%s123 + $0x60] sm:$0xff]
                %150 = vst [vmem:[%s124 + $0x60] sm:$0xff] %v149
                %v151 = vld [vmem:[%s123 + $0x68] sm:$0xff]
                %152 = vst [vmem:[%s124 + $0x68] sm:$0xff] %v151
                %v153 = vld [vmem:[%s123 + $0x70] sm:$0xff]
                %154 = vst [vmem:[%s124 + $0x70] sm:$0xff] %v153
                %v155 = vld [vmem:[%s123 + $0x78] sm:$0xff]
                %156 = vst [vmem:[%s124 + $0x78] sm:$0xff] %v155
                %v157 = vld [vmem:[%s123 + $0x80] sm:$0xff]
                %158 = vst [vmem:[%s124 + $0x80] sm:$0xff] %v157
                %v159 = vld [vmem:[%s123 + $0x88] sm:$0xff]
                %160 = vst [vmem:[%s124 + $0x88] sm:$0xff] %v159
                %v161 = vld [vmem:[%s123 + $0x120] sm:$0xff]
                %162 = vst [vmem:[%s124 + $0x90] sm:$0xff] %v161
                %v163 = vld [vmem:[%s123 + $0x128] sm:$0xff]
                %164 = vst [vmem:[%s124 + $0x98] sm:$0xff] %v163
                %v165 = vld [vmem:[%s123 + $0x130] sm:$0xff]
                %166 = vst [vmem:[%s124 + $0xa0] sm:$0xff] %v165
                %v167 = vld [vmem:[%s123 + $0x138] sm:$0xff]
                %168 = vst [vmem:[%s124 + $0xa8] sm:$0xff] %v167
                %v169 = vld [vmem:[%s123 + $0x140] sm:$0xff]
                %170 = vst [vmem:[%s124 + $0xb0] sm:$0xff] %v169
                %v171 = vld [vmem:[%s123 + $0x148] sm:$0xff]
                %172 = vst [vmem:[%s124 + $0xb8] sm:$0xff] %v171
                %v173 = vld [vmem:[%s123 + $0x150] sm:$0xff]
                %174 = vst [vmem:[%s124 + $0xc0] sm:$0xff] %v173
                %v175 = vld [vmem:[%s123 + $0x158] sm:$0xff]
                %176 = vst [vmem:[%s124 + $0xc8] sm:$0xff] %v175
                %v177 = vld [vmem:[%s123 + $0x160] sm:$0xff]
                %178 = vst [vmem:[%s124 + $0xd0] sm:$0xff] %v177
                %v179 = vld [vmem:[%s123 + $0x168] sm:$0xff]
                %180 = vst [vmem:[%s124 + $0xd8] sm:$0xff] %v179
                %v181 = vld [vmem:[%s123 + $0x170] sm:$0xff]
                %182 = vst [vmem:[%s124 + $0xe0] sm:$0xff] %v181
                %v183 = vld [vmem:[%s123 + $0x178] sm:$0xff]
                %184 = vst [vmem:[%s124 + $0xe8] sm:$0xff] %v183
                %v185 = vld [vmem:[%s123 + $0x180] sm:$0xff]
                %186 = vst [vmem:[%s124 + $0xf0] sm:$0xff] %v185
                %v187 = vld [vmem:[%s123 + $0x188] sm:$0xff]
                %188 = vst [vmem:[%s124 + $0xf8] sm:$0xff] %v187
                %v189 = vld [vmem:[%s123 + $0x190] sm:$0xff]
                %190 = vst [vmem:[%s124 + $0x100] sm:$0xff] %v189
                %v191 = vld [vmem:[%s123 + $0x198] sm:$0xff]
                %192 = vst [vmem:[%s124 + $0x108] sm:$0xff] %v191
                %v193 = vld [vmem:[%s123 + $0x1a0] sm:$0xff]
                %194 = vst [vmem:[%s124 + $0x110] sm:$0xff] %v193
                %v195 = vld [vmem:[%s123 + $0x1a8] sm:$0xff]
                %196 = vst [vmem:[%s124 + $0x118] sm:$0xff] %v195
                %v197 = vld [vmem:[%s123 + $0x240] sm:$0xff]
                %198 = vst [vmem:[%s124 + $0x120] sm:$0xff] %v197
                %v199 = vld [vmem:[%s123 + $0x248] sm:$0xff]
                %200 = vst [vmem:[%s124 + $0x128] sm:$0xff] %v199
                %v201 = vld [vmem:[%s123 + $0x250] sm:$0xff]
                %202 = vst [vmem:[%s124 + $0x130] sm:$0xff] %v201
                %v203 = vld [vmem:[%s123 + $0x258] sm:$0xff]
                %204 = vst [vmem:[%s124 + $0x138] sm:$0xff] %v203
                %v205 = vld [vmem:[%s123 + $0x260] sm:$0xff]
                %206 = vst [vmem:[%s124 + $0x140] sm:$0xff] %v205
                %v207 = vld [vmem:[%s123 + $0x268] sm:$0xff]
                %208 = vst [vmem:[%s124 + $0x148] sm:$0xff] %v207
                %v209 = vld [vmem:[%s123 + $0x270] sm:$0xff]
                %210 = vst [vmem:[%s124 + $0x150] sm:$0xff] %v209
                %v211 = vld [vmem:[%s123 + $0x278] sm:$0xff]
                %212 = vst [vmem:[%s124 + $0x158] sm:$0xff] %v211
                %v213 = vld [vmem:[%s123 + $0x280] sm:$0xff]
                %214 = vst [vmem:[%s124 + $0x160] sm:$0xff] %v213
                %v215 = vld [vmem:[%s123 + $0x288] sm:$0xff]
                %216 = vst [vmem:[%s124 + $0x168] sm:$0xff] %v215
                %v217 = vld [vmem:[%s123 + $0x290] sm:$0xff]
                %218 = vst [vmem:[%s124 + $0x170] sm:$0xff] %v217
                %v219 = vld [vmem:[%s123 + $0x298] sm:$0xff]
                %220 = vst [vmem:[%s124 + $0x178] sm:$0xff] %v219
                %v221 = vld [vmem:[%s123 + $0x2a0] sm:$0xff]
                %222 = vst [vmem:[%s124 + $0x180] sm:$0xff] %v221
                %v223 = vld [vmem:[%s123 + $0x2a8] sm:$0xff]
                %224 = vst [vmem:[%s124 + $0x188] sm:$0xff] %v223
                %v225 = vld [vmem:[%s123 + $0x2b0] sm:$0xff]
                %226 = vst [vmem:[%s124 + $0x190] sm:$0xff] %v225
                %v227 = vld [vmem:[%s123 + $0x2b8] sm:$0xff]
                %228 = vst [vmem:[%s124 + $0x198] sm:$0xff] %v227
                %v229 = vld [vmem:[%s123 + $0x2c0] sm:$0xff]
                %230 = vst [vmem:[%s124 + $0x1a0] sm:$0xff] %v229
                %v231 = vld [vmem:[%s123 + $0x2c8] sm:$0xff]
                %232 = vst [vmem:[%s124 + $0x1a8] sm:$0xff] %v231
                %v233 = vld [vmem:[%s123 + $0x360] sm:$0xff]
                %234 = vst [vmem:[%s124 + $0x1b0] sm:$0xff] %v233
                %v235 = vld [vmem:[%s123 + $0x368] sm:$0xff]
                %236 = vst [vmem:[%s124 + $0x1b8] sm:$0xff] %v235
                %v237 = vld [vmem:[%s123 + $0x370] sm:$0xff]
                %238 = vst [vmem:[%s124 + $0x1c0] sm:$0xff] %v237
                %v239 = vld [vmem:[%s123 + $0x378] sm:$0xff]
                %240 = vst [vmem:[%s124 + $0x1c8] sm:$0xff] %v239
                %v241 = vld [vmem:[%s123 + $0x380] sm:$0xff]
                %242 = vst [vmem:[%s124 + $0x1d0] sm:$0xff] %v241
                %v243 = vld [vmem:[%s123 + $0x388] sm:$0xff]
                %244 = vst [vmem:[%s124 + $0x1d8] sm:$0xff] %v243
                %v245 = vld [vmem:[%s123 + $0x390] sm:$0xff]
                %246 = vst [vmem:[%s124 + $0x1e0] sm:$0xff] %v245
                %v247 = vld [vmem:[%s123 + $0x398] sm:$0xff]
                %248 = vst [vmem:[%s124 + $0x1e8] sm:$0xff] %v247
                %v249 = vld [vmem:[%s123 + $0x3a0] sm:$0xff]
                %250 = vst [vmem:[%s124 + $0x1f0] sm:$0xff] %v249
                %v251 = vld [vmem:[%s123 + $0x3a8] sm:$0xff]
                %252 = vst [vmem:[%s124 + $0x1f8] sm:$0xff] %v251
                %v253 = vld [vmem:[%s123 + $0x3b0] sm:$0xff]
                %254 = vst [vmem:[%s124 + $0x200] sm:$0xff] %v253
                %v255 = vld [vmem:[%s123 + $0x3b8] sm:$0xff]
                %256 = vst [vmem:[%s124 + $0x208] sm:$0xff] %v255
                %v257 = vld [vmem:[%s123 + $0x3c0] sm:$0xff]
                %258 = vst [vmem:[%s124 + $0x210] sm:$0xff] %v257
                %v259 = vld [vmem:[%s123 + $0x3c8] sm:$0xff]
                %260 = vst [vmem:[%s124 + $0x218] sm:$0xff] %v259
                %v261 = vld [vmem:[%s123 + $0x3d0] sm:$0xff]
                %262 = vst [vmem:[%s124 + $0x220] sm:$0xff] %v261
                %v263 = vld [vmem:[%s123 + $0x3d8] sm:$0xff]
                %264 = vst [vmem:[%s124 + $0x228] sm:$0xff] %v263
                %v265 = vld [vmem:[%s123 + $0x3e0] sm:$0xff]
                %266 = vst [vmem:[%s124 + $0x230] sm:$0xff] %v265
                %v267 = vld [vmem:[%s123 + $0x3e8] sm:$0xff]
                %268 = vst [vmem:[%s124 + $0x238] sm:$0xff] %v267
                %v269 = vld [vmem:[%s123 + $0x480] sm:$0xff]
                %270 = vst [vmem:[%s124 + $0x240] sm:$0xff] %v269
                %v271 = vld [vmem:[%s123 + $0x488] sm:$0xff]
                %272 = vst [vmem:[%s124 + $0x248] sm:$0xff] %v271
                %v273 = vld [vmem:[%s123 + $0x490] sm:$0xff]
                %274 = vst [vmem:[%s124 + $0x250] sm:$0xff] %v273
                %v275 = vld [vmem:[%s123 + $0x498] sm:$0xff]
                %276 = vst [vmem:[%s124 + $0x258] sm:$0xff] %v275
                %v277 = vld [vmem:[%s123 + $0x4a0] sm:$0xff]
                %278 = vst [vmem:[%s124 + $0x260] sm:$0xff] %v277
                %v279 = vld [vmem:[%s123 + $0x4a8] sm:$0xff]
                %280 = vst [vmem:[%s124 + $0x268] sm:$0xff] %v279
                %v281 = vld [vmem:[%s123 + $0x4b0] sm:$0xff]
                %282 = vst [vmem:[%s124 + $0x270] sm:$0xff] %v281
                %v283 = vld [vmem:[%s123 + $0x4b8] sm:$0xff]
                %284 = vst [vmem:[%s124 + $0x278] sm:$0xff] %v283
                %v285 = vld [vmem:[%s123 + $0x4c0] sm:$0xff]
                %286 = vst [vmem:[%s124 + $0x280] sm:$0xff] %v285
                %v287 = vld [vmem:[%s123 + $0x4c8] sm:$0xff]
                %288 = vst [vmem:[%s124 + $0x288] sm:$0xff] %v287
                %v289 = vld [vmem:[%s123 + $0x4d0] sm:$0xff]
                %290 = vst [vmem:[%s124 + $0x290] sm:$0xff] %v289
                %v291 = vld [vmem:[%s123 + $0x4d8] sm:$0xff]
                %292 = vst [vmem:[%s124 + $0x298] sm:$0xff] %v291
                %v293 = vld [vmem:[%s123 + $0x4e0] sm:$0xff]
                %294 = vst [vmem:[%s124 + $0x2a0] sm:$0xff] %v293
                %v295 = vld [vmem:[%s123 + $0x4e8] sm:$0xff]
                %296 = vst [vmem:[%s124 + $0x2a8] sm:$0xff] %v295
                %v297 = vld [vmem:[%s123 + $0x4f0] sm:$0xff]
                %298 = vst [vmem:[%s124 + $0x2b0] sm:$0xff] %v297
                %v299 = vld [vmem:[%s123 + $0x4f8] sm:$0xff]
                %300 = vst [vmem:[%s124 + $0x2b8] sm:$0xff] %v299
                %v301 = vld [vmem:[%s123 + $0x500] sm:$0xff]
                %302 = vst [vmem:[%s124 + $0x2c0] sm:$0xff] %v301
                %v303 = vld [vmem:[%s123 + $0x508] sm:$0xff]
                %304 = vst [vmem:[%s124 + $0x2c8] sm:$0xff] %v303
                %v305 = vld [vmem:[%s123 + $0x5a0] sm:$0xff]
                %306 = vst [vmem:[%s124 + $0x2d0] sm:$0xff] %v305
                %v307 = vld [vmem:[%s123 + $0x5a8] sm:$0xff]
                %308 = vst [vmem:[%s124 + $0x2d8] sm:$0xff] %v307
                %v309 = vld [vmem:[%s123 + $0x5b0] sm:$0xff]
                %310 = vst [vmem:[%s124 + $0x2e0] sm:$0xff] %v309
                %v311 = vld [vmem:[%s123 + $0x5b8] sm:$0xff]
                %312 = vst [vmem:[%s124 + $0x2e8] sm:$0xff] %v311
                %v313 = vld [vmem:[%s123 + $0x5c0] sm:$0xff]
                %314 = vst [vmem:[%s124 + $0x2f0] sm:$0xff] %v313
                %v315 = vld [vmem:[%s123 + $0x5c8] sm:$0xff]
                %316 = vst [vmem:[%s124 + $0x2f8] sm:$0xff] %v315
                %v317 = vld [vmem:[%s123 + $0x5d0] sm:$0xff]
                %318 = vst [vmem:[%s124 + $0x300] sm:$0xff] %v317
                %v319 = vld [vmem:[%s123 + $0x5d8] sm:$0xff]
                %320 = vst [vmem:[%s124 + $0x308] sm:$0xff] %v319
                %v321 = vld [vmem:[%s123 + $0x5e0] sm:$0xff]
                %322 = vst [vmem:[%s124 + $0x310] sm:$0xff] %v321
                %v323 = vld [vmem:[%s123 + $0x5e8] sm:$0xff]
                %324 = vst [vmem:[%s124 + $0x318] sm:$0xff] %v323
                %v325 = vld [vmem:[%s123 + $0x5f0] sm:$0xff]
                %326 = vst [vmem:[%s124 + $0x320] sm:$0xff] %v325
                %v327 = vld [vmem:[%s123 + $0x5f8] sm:$0xff]
                %328 = vst [vmem:[%s124 + $0x328] sm:$0xff] %v327
                %v329 = vld [vmem:[%s123 + $0x600] sm:$0xff]
                %330 = vst [vmem:[%s124 + $0x330] sm:$0xff] %v329
                %v331 = vld [vmem:[%s123 + $0x608] sm:$0xff]
                %332 = vst [vmem:[%s124 + $0x338] sm:$0xff] %v331
                %v333 = vld [vmem:[%s123 + $0x610] sm:$0xff]
                %334 = vst [vmem:[%s124 + $0x340] sm:$0xff] %v333
                %v335 = vld [vmem:[%s123 + $0x618] sm:$0xff]
                %336 = vst [vmem:[%s124 + $0x348] sm:$0xff] %v335
                %v337 = vld [vmem:[%s123 + $0x620] sm:$0xff]
                %338 = vst [vmem:[%s124 + $0x350] sm:$0xff] %v337
                %v339 = vld [vmem:[%s123 + $0x628] sm:$0xff]
                %340 = vst [vmem:[%s124 + $0x358] sm:$0xff] %v339
                %v341 = vld [vmem:[%s123 + $0x6c0] sm:$0xff]
                %342 = vst [vmem:[%s124 + $0x360] sm:$0xff] %v341
                %v343 = vld [vmem:[%s123 + $0x6c8] sm:$0xff]
                %344 = vst [vmem:[%s124 + $0x368] sm:$0xff] %v343
                %v345 = vld [vmem:[%s123 + $0x6d0] sm:$0xff]
                %346 = vst [vmem:[%s124 + $0x370] sm:$0xff] %v345
                %v347 = vld [vmem:[%s123 + $0x6d8] sm:$0xff]
                %348 = vst [vmem:[%s124 + $0x378] sm:$0xff] %v347
                %v349 = vld [vmem:[%s123 + $0x6e0] sm:$0xff]
                %350 = vst [vmem:[%s124 + $0x380] sm:$0xff] %v349
                %v351 = vld [vmem:[%s123 + $0x6e8] sm:$0xff]
                %352 = vst [vmem:[%s124 + $0x388] sm:$0xff] %v351
                %v353 = vld [vmem:[%s123 + $0x6f0] sm:$0xff]
                %354 = vst [vmem:[%s124 + $0x390] sm:$0xff] %v353
                %v355 = vld [vmem:[%s123 + $0x6f8] sm:$0xff]
                %356 = vst [vmem:[%s124 + $0x398] sm:$0xff] %v355
                %v357 = vld [vmem:[%s123 + $0x700] sm:$0xff]
                %358 = vst [vmem:[%s124 + $0x3a0] sm:$0xff] %v357
                %v359 = vld [vmem:[%s123 + $0x708] sm:$0xff]
                %360 = vst [vmem:[%s124 + $0x3a8] sm:$0xff] %v359
                %v361 = vld [vmem:[%s123 + $0x710] sm:$0xff]
                %362 = vst [vmem:[%s124 + $0x3b0] sm:$0xff] %v361
                %v363 = vld [vmem:[%s123 + $0x718] sm:$0xff]
                %364 = vst [vmem:[%s124 + $0x3b8] sm:$0xff] %v363
                %v365 = vld [vmem:[%s123 + $0x720] sm:$0xff]
                %366 = vst [vmem:[%s124 + $0x3c0] sm:$0xff] %v365
                %v367 = vld [vmem:[%s123 + $0x728] sm:$0xff]
                %368 = vst [vmem:[%s124 + $0x3c8] sm:$0xff] %v367
                %v369 = vld [vmem:[%s123 + $0x730] sm:$0xff]
                %370 = vst [vmem:[%s124 + $0x3d0] sm:$0xff] %v369
                %v371 = vld [vmem:[%s123 + $0x738] sm:$0xff]
                %372 = vst [vmem:[%s124 + $0x3d8] sm:$0xff] %v371
                %v373 = vld [vmem:[%s123 + $0x740] sm:$0xff]
                %374 = vst [vmem:[%s124 + $0x3e0] sm:$0xff] %v373
                %v375 = vld [vmem:[%s123 + $0x748] sm:$0xff]
                %376 = vst [vmem:[%s124 + $0x3e8] sm:$0xff] %v375
                %v377 = vld [vmem:[%s123 + $0x7e0] sm:$0xff]
                %378 = vst [vmem:[%s124 + $0x3f0] sm:$0xff] %v377
                %v379 = vld [vmem:[%s123 + $0x7e8] sm:$0xff]
                %380 = vst [vmem:[%s124 + $0x3f8] sm:$0xff] %v379
                %v381 = vld [vmem:[%s123 + $0x7f0] sm:$0xff]
                %382 = vst [vmem:[%s124 + $0x400] sm:$0xff] %v381
                %v383 = vld [vmem:[%s123 + $0x7f8] sm:$0xff]
                %384 = vst [vmem:[%s124 + $0x408] sm:$0xff] %v383
                %v385 = vld [vmem:[%s123 + $0x800] sm:$0xff]
                %386 = vst [vmem:[%s124 + $0x410] sm:$0xff] %v385
                %v387 = vld [vmem:[%s123 + $0x808] sm:$0xff]
                %388 = vst [vmem:[%s124 + $0x418] sm:$0xff] %v387
                %v389 = vld [vmem:[%s123 + $0x810] sm:$0xff]
                %390 = vst [vmem:[%s124 + $0x420] sm:$0xff] %v389
                %v391 = vld [vmem:[%s123 + $0x818] sm:$0xff]
                %392 = vst [vmem:[%s124 + $0x428] sm:$0xff] %v391
                %v393 = vld [vmem:[%s123 + $0x820] sm:$0xff]
                %394 = vst [vmem:[%s124 + $0x430] sm:$0xff] %v393
                %v395 = vld [vmem:[%s123 + $0x828] sm:$0xff]
                %396 = vst [vmem:[%s124 + $0x438] sm:$0xff] %v395
                %v397 = vld [vmem:[%s123 + $0x830] sm:$0xff]
                %398 = vst [vmem:[%s124 + $0x440] sm:$0xff] %v397
                %v399 = vld [vmem:[%s123 + $0x838] sm:$0xff]
                %400 = vst [vmem:[%s124 + $0x448] sm:$0xff] %v399
                %v401 = vld [vmem:[%s123 + $0x840] sm:$0xff]
                %402 = vst [vmem:[%s124 + $0x450] sm:$0xff] %v401
                %v403 = vld [vmem:[%s123 + $0x848] sm:$0xff]
                %404 = vst [vmem:[%s124 + $0x458] sm:$0xff] %v403
                %v405 = vld [vmem:[%s123 + $0x850] sm:$0xff]
                %406 = vst [vmem:[%s124 + $0x460] sm:$0xff] %v405
                %v407 = vld [vmem:[%s123 + $0x858] sm:$0xff]
                %408 = vst [vmem:[%s124 + $0x468] sm:$0xff] %v407
                %v409 = vld [vmem:[%s123 + $0x860] sm:$0xff]
                %410 = vst [vmem:[%s124 + $0x470] sm:$0xff] %v409
                %v411 = vld [vmem:[%s123 + $0x868] sm:$0xff]
                %412 = vst [vmem:[%s124 + $0x478] sm:$0xff] %v411
                %v413 = vld [vmem:[%s123 + $0x900] sm:$0xff]
                %414 = vst [vmem:[%s124 + $0x480] sm:$0xff] %v413
                %v415 = vld [vmem:[%s123 + $0x908] sm:$0xff]
                %416 = vst [vmem:[%s124 + $0x488] sm:$0xff] %v415
                %v417 = vld [vmem:[%s123 + $0x910] sm:$0xff]
                %418 = vst [vmem:[%s124 + $0x490] sm:$0xff] %v417
                %v419 = vld [vmem:[%s123 + $0x918] sm:$0xff]
                %420 = vst [vmem:[%s124 + $0x498] sm:$0xff] %v419
                %v421 = vld [vmem:[%s123 + $0x920] sm:$0xff]
                %422 = vst [vmem:[%s124 + $0x4a0] sm:$0xff] %v421
                %v423 = vld [vmem:[%s123 + $0x928] sm:$0xff]
                %424 = vst [vmem:[%s124 + $0x4a8] sm:$0xff] %v423
                %v425 = vld [vmem:[%s123 + $0x930] sm:$0xff]
                %426 = vst [vmem:[%s124 + $0x4b0] sm:$0xff] %v425
                %v427 = vld [vmem:[%s123 + $0x938] sm:$0xff]
                %428 = vst [vmem:[%s124 + $0x4b8] sm:$0xff] %v427
                %v429 = vld [vmem:[%s123 + $0x940] sm:$0xff]
                %430 = vst [vmem:[%s124 + $0x4c0] sm:$0xff] %v429
                %v431 = vld [vmem:[%s123 + $0x948] sm:$0xff]
                %432 = vst [vmem:[%s124 + $0x4c8] sm:$0xff] %v431
                %v433 = vld [vmem:[%s123 + $0x950] sm:$0xff]
                %434 = vst [vmem:[%s124 + $0x4d0] sm:$0xff] %v433
                %v435 = vld [vmem:[%s123 + $0x958] sm:$0xff]
                %436 = vst [vmem:[%s124 + $0x4d8] sm:$0xff] %v435
                %v437 = vld [vmem:[%s123 + $0x960] sm:$0xff]
                %438 = vst [vmem:[%s124 + $0x4e0] sm:$0xff] %v437
                %v439 = vld [vmem:[%s123 + $0x968] sm:$0xff]
                %440 = vst [vmem:[%s124 + $0x4e8] sm:$0xff] %v439
                %v441 = vld [vmem:[%s123 + $0x970] sm:$0xff]
                %442 = vst [vmem:[%s124 + $0x4f0] sm:$0xff] %v441
                %v443 = vld [vmem:[%s123 + $0x978] sm:$0xff]
                %444 = vst [vmem:[%s124 + $0x4f8] sm:$0xff] %v443
                %v445 = vld [vmem:[%s123 + $0x980] sm:$0xff]
                %446 = vst [vmem:[%s124 + $0x500] sm:$0xff] %v445
                %v447 = vld [vmem:[%s123 + $0x988] sm:$0xff]
                %448 = vst [vmem:[%s124 + $0x508] sm:$0xff] %v447
                %v449 = vld [vmem:[%s123 + $0xa20] sm:$0xff]
                %450 = vst [vmem:[%s124 + $0x510] sm:$0xff] %v449
                %v451 = vld [vmem:[%s123 + $0xa28] sm:$0xff]
                %452 = vst [vmem:[%s124 + $0x518] sm:$0xff] %v451
                %v453 = vld [vmem:[%s123 + $0xa30] sm:$0xff]
                %454 = vst [vmem:[%s124 + $0x520] sm:$0xff] %v453
                %v455 = vld [vmem:[%s123 + $0xa38] sm:$0xff]
                %456 = vst [vmem:[%s124 + $0x528] sm:$0xff] %v455
                %v457 = vld [vmem:[%s123 + $0xa40] sm:$0xff]
                %458 = vst [vmem:[%s124 + $0x530] sm:$0xff] %v457
                %v459 = vld [vmem:[%s123 + $0xa48] sm:$0xff]
                %460 = vst [vmem:[%s124 + $0x538] sm:$0xff] %v459
                %v461 = vld [vmem:[%s123 + $0xa50] sm:$0xff]
                %462 = vst [vmem:[%s124 + $0x540] sm:$0xff] %v461
                %v463 = vld [vmem:[%s123 + $0xa58] sm:$0xff]
                %464 = vst [vmem:[%s124 + $0x548] sm:$0xff] %v463
                %v465 = vld [vmem:[%s123 + $0xa60] sm:$0xff]
                %466 = vst [vmem:[%s124 + $0x550] sm:$0xff] %v465
                %v467 = vld [vmem:[%s123 + $0xa68] sm:$0xff]
                %468 = vst [vmem:[%s124 + $0x558] sm:$0xff] %v467
                %v469 = vld [vmem:[%s123 + $0xa70] sm:$0xff]
                %470 = vst [vmem:[%s124 + $0x560] sm:$0xff] %v469
                %v471 = vld [vmem:[%s123 + $0xa78] sm:$0xff]
                %472 = vst [vmem:[%s124 + $0x568] sm:$0xff] %v471
                %v473 = vld [vmem:[%s123 + $0xa80] sm:$0xff]
                %474 = vst [vmem:[%s124 + $0x570] sm:$0xff] %v473
                %v475 = vld [vmem:[%s123 + $0xa88] sm:$0xff]
                %476 = vst [vmem:[%s124 + $0x578] sm:$0xff] %v475
                %v477 = vld [vmem:[%s123 + $0xa90] sm:$0xff]
                %478 = vst [vmem:[%s124 + $0x580] sm:$0xff] %v477
                %v479 = vld [vmem:[%s123 + $0xa98] sm:$0xff]
                %480 = vst [vmem:[%s124 + $0x588] sm:$0xff] %v479
                %v481 = vld [vmem:[%s123 + $0xaa0] sm:$0xff]
                %482 = vst [vmem:[%s124 + $0x590] sm:$0xff] %v481
                %v483 = vld [vmem:[%s123 + $0xaa8] sm:$0xff]
                %484 = vst [vmem:[%s124 + $0x598] sm:$0xff] %v483
              $region37: #{conv_block2_forward.7} parent=31 // loop_footer
                %s122 = sadd.s32 1, %s118
              $region38: #{conv_block2_forward.7} parent=31 // loop_footer_branch
                %117 = sbr.rel target = $region34
              $region39: #{conv_block2_forward.7} parent=31 // loop_exit
                _
            $region32: #{conv_block2_forward.7} parent=27 // pred_fallthru
              _
            // Predicated region
            $region40: #{conv_block2_forward.7} parent=27 // pred_check
              _
            $region41: #{conv_block2_forward.7} parent=27 // pred_check_branch
              %486 = sbr.rel target = $region43
            $region42: #{conv_block2_forward.7} parent=27 // pred_region
              _
            $region43: #{conv_block2_forward.7} parent=27 // pred_fallthru
              _
          $region28: #{conv_block2_forward.7} parent=23 // pred_fallthru
            _
          %487 = vnop
        $region24: #{conv_block2_forward.7} parent=19 // pred_fallthru
          _
      $region20: #{conv_block2_forward.7} parent=5 // pred_fallthru
        _
      %p488 = scmp.le.s32.totalorder 1, %s8
      %p489 = scmp.lt.s32.totalorder %s8, 3
      %p490 = pnand %p488, %p489
      %p491 = pneg %p490
      // Predicated region
      $region44: #{conv_block2_forward.7} parent=5 // pred_check
        _
      $region45: #{conv_block2_forward.7} parent=5 // pred_check_branch
        %493 = sbr.rel (%p490) target = $region47
      $region46: #{conv_block2_forward.7} parent=5 // pred_region
        %s494 = ssub.s32 %s8, 1
        %s495 = sand.u32 %s42, 1
        %s496 = sand.u32 %s42, 1
        %s497 = smul.addr %s496, 1440
        %s498 = scalar_lea.vmem [#allocation2], %s497
        // Predicated region
        $region48: #{conv_block2_forward.7} parent=46 // pred_check
          %p499 = pneg %p55
        $region49: #{conv_block2_forward.7} parent=46 // pred_check_branch
          %501 = sbr.rel (%p499) target = $region51
        $region50: #{conv_block2_forward.7} parent=46 // pred_region
          _
        $region51: #{conv_block2_forward.7} parent=46 // pred_fallthru
          _
        %p502 = pneg %p29
        %p503 = pneg %p26
        %s504 = sand.u32 %s42, 1
        %s505 = sand.u32 %s42, 1
        %s506 = smul.addr %s505, 1440
        %s507 = scalar_lea.vmem [#allocation2], %s506
        %p508 = pneg %p55
        %p509 = pneg %p52
        %p510 = pneg %p81
        %p511 = pneg %p78
        %s512 = smul.u32 18, %s13
        %p513 = scmp.lt.s32.totalorder %s512, 35
        %s514 = scalar_select %p513, %s512, 35
        %s515 = smul.addr %s514, 8
        %s516 = scalar_lea.vmem %s2, %s515
        %s517 = smul.u32 18, %s13
        %s518 = smul.u32 18, %s13
        %p519 = scmp.lt.s32.totalorder %s518, 35
        %s520 = scalar_select %p519, %s518, 35
        %s521 = smul.addr %s520, 8
        %s522 = scalar_lea.vmem %s2, %s521
        %s523 = smul.u32 18, %s13
        %v524 = vld [vmem:[%s0] sm:$0xff]
        %v525 = vld [vmem:[%s498] sm:$0xff]
        %v526 = vld [vmem:[%s498 + $0x8] sm:$0xff]
        %v527 = vld [vmem:[%s498 + $0x10] sm:$0xff]
        %v528 = vld [vmem:[%s498 + $0x18] sm:$0xff]
        %v529 = vld [vmem:[%s498 + $0x20] sm:$0xff]
        %v530 = vld [vmem:[%s498 + $0x28] sm:$0xff]
        %v531 = vld [vmem:[%s498 + $0x30] sm:$0xff]
        %v532 = vld [vmem:[%s498 + $0x38] sm:$0xff]
        %v533 = vld [vmem:[%s498 + $0x40] sm:$0xff]
        %v534 = vld [vmem:[%s498 + $0x48] sm:$0xff]
        %v535 = vld [vmem:[%s498 + $0x50] sm:$0xff]
        %v536 = vld [vmem:[%s498 + $0x58] sm:$0xff]
        %v537 = vld [vmem:[%s498 + $0x60] sm:$0xff]
        %v538 = vld [vmem:[%s498 + $0x68] sm:$0xff]
        %v539 = vld [vmem:[%s498 + $0x70] sm:$0xff]
        %v540 = vld [vmem:[%s498 + $0x78] sm:$0xff]
        %v541 = vld [vmem:[%s498 + $0x80] sm:$0xff]
        %v542 = vld [vmem:[%s498 + $0x88] sm:$0xff]
        %v543 = vld [vmem:[%s498 + $0x90] sm:$0xff]
        %v544 = vld [vmem:[%s498 + $0x98] sm:$0xff]
        %v545 = vld [vmem:[%s498 + $0xa0] sm:$0xff]
        %v546 = vld [vmem:[%s498 + $0xa8] sm:$0xff]
        %v547 = vld [vmem:[%s498 + $0xb0] sm:$0xff]
        %v548 = vld [vmem:[%s498 + $0xb8] sm:$0xff]
        %v549 = vld [vmem:[%s498 + $0xc0] sm:$0xff]
        %v550 = vld [vmem:[%s498 + $0xc8] sm:$0xff]
        %v551 = vld [vmem:[%s498 + $0xd0] sm:$0xff]
        %v552 = vld [vmem:[%s498 + $0xd8] sm:$0xff]
        %v553 = vld [vmem:[%s498 + $0xe0] sm:$0xff]
        %v554 = vld [vmem:[%s498 + $0xe8] sm:$0xff]
        %v555 = vld [vmem:[%s498 + $0xf0] sm:$0xff]
        %v556 = vld [vmem:[%s498 + $0xf8] sm:$0xff]
        %v557 = vld [vmem:[%s498 + $0x100] sm:$0xff]
        %v558 = vld [vmem:[%s498 + $0x108] sm:$0xff]
        %v559 = vld [vmem:[%s498 + $0x110] sm:$0xff]
        %v560 = vld [vmem:[%s498 + $0x118] sm:$0xff]
        %v561 = vld [vmem:[%s498 + $0x120] sm:$0xff]
        %v562 = vld [vmem:[%s498 + $0x128] sm:$0xff]
        %v563 = vld [vmem:[%s498 + $0x130] sm:$0xff]
        %v564 = vld [vmem:[%s498 + $0x138] sm:$0xff]
        %v565 = vld [vmem:[%s498 + $0x140] sm:$0xff]
        %v566 = vld [vmem:[%s498 + $0x148] sm:$0xff]
        %v567 = vld [vmem:[%s498 + $0x150] sm:$0xff]
        %v568 = vld [vmem:[%s498 + $0x158] sm:$0xff]
        %v569 = vld [vmem:[%s498 + $0x160] sm:$0xff]
        %v570 = vld [vmem:[%s498 + $0x168] sm:$0xff]
        %v571 = vld [vmem:[%s498 + $0x170] sm:$0xff]
        %v572 = vld [vmem:[%s498 + $0x178] sm:$0xff]
        %v573 = vld [vmem:[%s498 + $0x180] sm:$0xff]
        %v574 = vld [vmem:[%s498 + $0x188] sm:$0xff]
        %v575 = vld [vmem:[%s498 + $0x190] sm:$0xff]
        %v576 = vld [vmem:[%s498 + $0x198] sm:$0xff]
        %v577 = vld [vmem:[%s498 + $0x1a0] sm:$0xff]
        %v578 = vld [vmem:[%s498 + $0x1a8] sm:$0xff]
        %v579 = vld [vmem:[%s498 + $0x1b0] sm:$0xff]
        %v580 = vld [vmem:[%s498 + $0x1b8] sm:$0xff]
        %v581 = vld [vmem:[%s498 + $0x1c0] sm:$0xff]
        %v582 = vld [vmem:[%s498 + $0x1c8] sm:$0xff]
        %v583 = vld [vmem:[%s498 + $0x1d0] sm:$0xff]
        %v584 = vld [vmem:[%s498 + $0x1d8] sm:$0xff]
        %v585 = vld [vmem:[%s498 + $0x1e0] sm:$0xff]
        %v586 = vld [vmem:[%s498 + $0x1e8] sm:$0xff]
        %v587 = vld [vmem:[%s498 + $0x1f0] sm:$0xff]
        %v588 = vld [vmem:[%s498 + $0x1f8] sm:$0xff]
        %v589 = vld [vmem:[%s498 + $0x200] sm:$0xff]
        %v590 = vld [vmem:[%s498 + $0x208] sm:$0xff]
        %v591 = vld [vmem:[%s498 + $0x210] sm:$0xff]
        %v592 = vld [vmem:[%s498 + $0x218] sm:$0xff]
        %v593 = vld [vmem:[%s498 + $0x220] sm:$0xff]
        %v594 = vld [vmem:[%s498 + $0x228] sm:$0xff]
        %v595 = vld [vmem:[%s498 + $0x230] sm:$0xff]
        %v596 = vld [vmem:[%s498 + $0x238] sm:$0xff]
        %v597 = vld [vmem:[%s498 + $0x240] sm:$0xff]
        %v598 = vld [vmem:[%s498 + $0x248] sm:$0xff]
        %v599 = vld [vmem:[%s498 + $0x250] sm:$0xff]
        %v600 = vld [vmem:[%s498 + $0x258] sm:$0xff]
        %v601 = vld [vmem:[%s498 + $0x260] sm:$0xff]
        %v602 = vld [vmem:[%s498 + $0x268] sm:$0xff]
        %v603 = vld [vmem:[%s498 + $0x270] sm:$0xff]
        %v604 = vld [vmem:[%s498 + $0x278] sm:$0xff]
        %v605 = vld [vmem:[%s498 + $0x280] sm:$0xff]
        %v606 = vld [vmem:[%s498 + $0x288] sm:$0xff]
        %v607 = vld [vmem:[%s498 + $0x290] sm:$0xff]
        %v608 = vld [vmem:[%s498 + $0x298] sm:$0xff]
        %v609 = vld [vmem:[%s498 + $0x2a0] sm:$0xff]
        %v610 = vld [vmem:[%s498 + $0x2a8] sm:$0xff]
        %v611 = vld [vmem:[%s498 + $0x2b0] sm:$0xff]
        %v612 = vld [vmem:[%s498 + $0x2b8] sm:$0xff]
        %v613 = vld [vmem:[%s498 + $0x2c0] sm:$0xff]
        %v614 = vld [vmem:[%s498 + $0x2c8] sm:$0xff]
        %v615 = vld [vmem:[%s498 + $0x2d0] sm:$0xff]
        %v616 = vld [vmem:[%s498 + $0x2d8] sm:$0xff]
        %v617 = vld [vmem:[%s498 + $0x2e0] sm:$0xff]
        %v618 = vld [vmem:[%s498 + $0x2e8] sm:$0xff]
        %v619 = vld [vmem:[%s498 + $0x2f0] sm:$0xff]
        %v620 = vld [vmem:[%s498 + $0x2f8] sm:$0xff]
        %v621 = vld [vmem:[%s498 + $0x300] sm:$0xff]
        %v622 = vld [vmem:[%s498 + $0x308] sm:$0xff]
        %v623 = vld [vmem:[%s498 + $0x310] sm:$0xff]
        %v624 = vld [vmem:[%s498 + $0x318] sm:$0xff]
        %v625 = vld [vmem:[%s498 + $0x320] sm:$0xff]
        %v626 = vld [vmem:[%s498 + $0x328] sm:$0xff]
        %v627 = vld [vmem:[%s498 + $0x330] sm:$0xff]
        %v628 = vld [vmem:[%s498 + $0x338] sm:$0xff]
        %v629 = vld [vmem:[%s498 + $0x340] sm:$0xff]
        %v630 = vld [vmem:[%s498 + $0x348] sm:$0xff]
        %v631 = vld [vmem:[%s498 + $0x350] sm:$0xff]
        %v632 = vld [vmem:[%s498 + $0x358] sm:$0xff]
        %v633 = vld [vmem:[%s498 + $0x360] sm:$0xff]
        %v634 = vld [vmem:[%s498 + $0x368] sm:$0xff]
        %v635 = vld [vmem:[%s498 + $0x370] sm:$0xff]
        %v636 = vld [vmem:[%s498 + $0x378] sm:$0xff]
        %v637 = vld [vmem:[%s498 + $0x380] sm:$0xff]
        %v638 = vld [vmem:[%s498 + $0x388] sm:$0xff]
        %v639 = vld [vmem:[%s498 + $0x390] sm:$0xff]
        %v640 = vld [vmem:[%s498 + $0x398] sm:$0xff]
        %v641 = vld [vmem:[%s498 + $0x3a0] sm:$0xff]
        %v642 = vld [vmem:[%s498 + $0x3a8] sm:$0xff]
        %v643 = vld [vmem:[%s498 + $0x3b0] sm:$0xff]
        %v644 = vld [vmem:[%s498 + $0x3b8] sm:$0xff]
        %v645 = vld [vmem:[%s498 + $0x3c0] sm:$0xff]
        %v646 = vld [vmem:[%s498 + $0x3c8] sm:$0xff]
        %v647 = vld [vmem:[%s498 + $0x3d0] sm:$0xff]
        %v648 = vld [vmem:[%s498 + $0x3d8] sm:$0xff]
        %v649 = vld [vmem:[%s498 + $0x3e0] sm:$0xff]
        %v650 = vld [vmem:[%s498 + $0x3e8] sm:$0xff]
        %v651 = vld [vmem:[%s498 + $0x3f0] sm:$0xff]
        %v652 = vld [vmem:[%s498 + $0x3f8] sm:$0xff]
        %v653 = vld [vmem:[%s498 + $0x400] sm:$0xff]
        %v654 = vld [vmem:[%s498 + $0x408] sm:$0xff]
        %v655 = vld [vmem:[%s498 + $0x410] sm:$0xff]
        %v656 = vld [vmem:[%s498 + $0x418] sm:$0xff]
        %v657 = vld [vmem:[%s498 + $0x420] sm:$0xff]
        %v658 = vld [vmem:[%s498 + $0x428] sm:$0xff]
        %v659 = vld [vmem:[%s498 + $0x430] sm:$0xff]
        %v660 = vld [vmem:[%s498 + $0x438] sm:$0xff]
        %v661 = vld [vmem:[%s498 + $0x440] sm:$0xff]
        %v662 = vld [vmem:[%s498 + $0x448] sm:$0xff]
        %v663 = vld [vmem:[%s498 + $0x450] sm:$0xff]
        %v664 = vld [vmem:[%s498 + $0x458] sm:$0xff]
        %v665 = vld [vmem:[%s498 + $0x460] sm:$0xff]
        %v666 = vld [vmem:[%s498 + $0x468] sm:$0xff]
        %v667 = vld [vmem:[%s498 + $0x470] sm:$0xff]
        %v668 = vld [vmem:[%s498 + $0x478] sm:$0xff]
        %v669 = vld [vmem:[%s498 + $0x480] sm:$0xff]
        %v670 = vld [vmem:[%s498 + $0x488] sm:$0xff]
        %v671 = vld [vmem:[%s498 + $0x490] sm:$0xff]
        %v672 = vld [vmem:[%s498 + $0x498] sm:$0xff]
        %v673 = vld [vmem:[%s498 + $0x4a0] sm:$0xff]
        %v674 = vld [vmem:[%s498 + $0x4a8] sm:$0xff]
        %v675 = vld [vmem:[%s498 + $0x4b0] sm:$0xff]
        %v676 = vld [vmem:[%s498 + $0x4b8] sm:$0xff]
        %v677 = vld [vmem:[%s498 + $0x4c0] sm:$0xff]
        %v678 = vld [vmem:[%s498 + $0x4c8] sm:$0xff]
        %v679 = vld [vmem:[%s498 + $0x4d0] sm:$0xff]
        %v680 = vld [vmem:[%s498 + $0x4d8] sm:$0xff]
        %v681 = vld [vmem:[%s498 + $0x4e0] sm:$0xff]
        %v682 = vld [vmem:[%s498 + $0x4e8] sm:$0xff]
        %v683 = vld [vmem:[%s498 + $0x4f0] sm:$0xff]
        %v684 = vld [vmem:[%s498 + $0x4f8] sm:$0xff]
        %v685 = vld [vmem:[%s498 + $0x500] sm:$0xff]
        %v686 = vld [vmem:[%s498 + $0x508] sm:$0xff]
        %v687 = vld [vmem:[%s498 + $0x510] sm:$0x1]
        %v688 = vld [vmem:[%s498 + $0x518] sm:$0x1]
        %v689 = vld [vmem:[%s498 + $0x520] sm:$0x1]
        %v690 = vld [vmem:[%s498 + $0x528] sm:$0x1]
        %v691 = vld [vmem:[%s498 + $0x530] sm:$0x1]
        %v692 = vld [vmem:[%s498 + $0x538] sm:$0x1]
        %v693 = vld [vmem:[%s498 + $0x540] sm:$0x1]
        %v694 = vld [vmem:[%s498 + $0x548] sm:$0x1]
        %v695 = vld [vmem:[%s498 + $0x550] sm:$0x1]
        %v696 = vld [vmem:[%s498 + $0x558] sm:$0x1]
        %v697 = vld [vmem:[%s498 + $0x560] sm:$0x1]
        %v698 = vld [vmem:[%s498 + $0x568] sm:$0x1]
        %v699 = vld [vmem:[%s498 + $0x570] sm:$0x1]
        %v700 = vld [vmem:[%s498 + $0x578] sm:$0x1]
        %v701 = vld [vmem:[%s498 + $0x580] sm:$0x1]
        %v702 = vld [vmem:[%s498 + $0x588] sm:$0x1]
        %v703 = vld [vmem:[%s498 + $0x590] sm:$0x1]
        %v704 = vld [vmem:[%s498 + $0x598] sm:$0x1]
        %vm705 = vcmask 596992
        %v707 = vsel %vm705, %v524, 0
        %vm709 = vcmask 1040384
        %v711 = vsel %vm709, %v687, 0
        %v714 = vsel %vm709, %v688, 0
        %v717 = vsel %vm709, %v689, 0
        %v720 = vsel %vm709, %v690, 0
        %v723 = vsel %vm709, %v691, 0
        %v726 = vsel %vm709, %v692, 0
        %v729 = vsel %vm709, %v693, 0
        %v732 = vsel %vm709, %v694, 0
        %v735 = vsel %vm709, %v695, 0
        %v738 = vsel %vm709, %v696, 0
        %v741 = vsel %vm709, %v697, 0
        %v744 = vsel %vm709, %v698, 0
        %v747 = vsel %vm709, %v699, 0
        %v750 = vsel %vm709, %v700, 0
        %v753 = vsel %vm709, %v701, 0
        %v756 = vsel %vm709, %v702, 0
        %v759 = vsel %vm709, %v703, 0
        %v762 = vsel %vm709, %v704, 0
        %764 = vmatpush.msra.mxu0 0.0
        %765 = vmatpush.msra.mxu0 0.0
        %766 = vmatpush.msra.mxu0 0.0
        %767 = vmatpush.msra.mxu0 0.0
        %768 = vmatpush.msra.mxu0 0.0
        %769 = vmatpush.msra.mxu0 0.0
        %770 = vmatpush.msra.mxu0 %v711
        %771 = vmatpush.msra.mxu0 %v669
        %772 = vmatpush.msra.mxu0 %v651
        %773 = vmatpush.msra.mxu0 %v633
        %774 = vmatpush.msra.mxu0 %v615
        %775 = vmatpush.msra.mxu0 %v597
        %776 = vmatpush.msra.mxu0 %v579
        %777 = vmatpush.msra.mxu0 %v561
        %778 = vmatpush.msra.mxu0 %v543
        %779 = vmatpush.msra.mxu0 %v525
        %780 = vmatmul.f32.gmra.mxu0 %v707
        %v781 = vpop.f32.mrf.mxu0
        %v782 = vadd.f32 0.0, %v781
        %783 = vdwg.mxu0
        %784 = vmatpush.msra.mxu0 0.0
        %785 = vmatpush.msra.mxu0 0.0
        %786 = vmatpush.msra.mxu0 0.0
        %787 = vmatpush.msra.mxu0 0.0
        %788 = vmatpush.msra.mxu0 0.0
        %789 = vmatpush.msra.mxu0 0.0
        %790 = vmatpush.msra.mxu0 %v714
        %791 = vmatpush.msra.mxu0 %v670
        %792 = vmatpush.msra.mxu0 %v652
        %793 = vmatpush.msra.mxu0 %v634
        %794 = vmatpush.msra.mxu0 %v616
        %795 = vmatpush.msra.mxu0 %v598
        %796 = vmatpush.msra.mxu0 %v580
        %797 = vmatpush.msra.mxu0 %v562
        %798 = vmatpush.msra.mxu0 %v544
        %799 = vmatpush.msra.mxu0 %v526
        %800 = vmatmul.f32.gmra.mxu0 %v707
        %v801 = vpop.f32.mrf.mxu0
        %v802 = vadd.f32 0.0, %v801
        %803 = vdwg.mxu0
        %804 = vmatpush.msra.mxu0 0.0
        %805 = vmatpush.msra.mxu0 0.0
        %806 = vmatpush.msra.mxu0 0.0
        %807 = vmatpush.msra.mxu0 0.0
        %808 = vmatpush.msra.mxu0 0.0
        %809 = vmatpush.msra.mxu0 0.0
        %810 = vmatpush.msra.mxu0 %v717
        %811 = vmatpush.msra.mxu0 %v671
        %812 = vmatpush.msra.mxu0 %v653
        %813 = vmatpush.msra.mxu0 %v635
        %814 = vmatpush.msra.mxu0 %v617
        %815 = vmatpush.msra.mxu0 %v599
        %816 = vmatpush.msra.mxu0 %v581
        %817 = vmatpush.msra.mxu0 %v563
        %818 = vmatpush.msra.mxu0 %v545
        %819 = vmatpush.msra.mxu0 %v527
        %820 = vmatmul.f32.gmra.mxu0 %v707
        %v821 = vpop.f32.mrf.mxu0
        %v822 = vadd.f32 0.0, %v821
        %823 = vdwg.mxu0
        %824 = vmatpush.msra.mxu0 0.0
        %825 = vmatpush.msra.mxu0 0.0
        %826 = vmatpush.msra.mxu0 0.0
        %827 = vmatpush.msra.mxu0 0.0
        %828 = vmatpush.msra.mxu0 0.0
        %829 = vmatpush.msra.mxu0 0.0
        %830 = vmatpush.msra.mxu0 %v720
        %831 = vmatpush.msra.mxu0 %v672
        %832 = vmatpush.msra.mxu0 %v654
        %833 = vmatpush.msra.mxu0 %v636
        %834 = vmatpush.msra.mxu0 %v618
        %835 = vmatpush.msra.mxu0 %v600
        %836 = vmatpush.msra.mxu0 %v582
        %837 = vmatpush.msra.mxu0 %v564
        %838 = vmatpush.msra.mxu0 %v546
        %839 = vmatpush.msra.mxu0 %v528
        %840 = vmatmul.f32.gmra.mxu0 %v707
        %v841 = vpop.f32.mrf.mxu0
        %v842 = vadd.f32 0.0, %v841
        %843 = vdwg.mxu0
        %844 = vmatpush.msra.mxu0 0.0
        %845 = vmatpush.msra.mxu0 0.0
        %846 = vmatpush.msra.mxu0 0.0
        %847 = vmatpush.msra.mxu0 0.0
        %848 = vmatpush.msra.mxu0 0.0
        %849 = vmatpush.msra.mxu0 0.0
        %850 = vmatpush.msra.mxu0 %v723
        %851 = vmatpush.msra.mxu0 %v673
        %852 = vmatpush.msra.mxu0 %v655
        %853 = vmatpush.msra.mxu0 %v637
        %854 = vmatpush.msra.mxu0 %v619
        %855 = vmatpush.msra.mxu0 %v601
        %856 = vmatpush.msra.mxu0 %v583
        %857 = vmatpush.msra.mxu0 %v565
        %858 = vmatpush.msra.mxu0 %v547
        %859 = vmatpush.msra.mxu0 %v529
        %860 = vmatmul.f32.gmra.mxu0 %v707
        %v861 = vpop.f32.mrf.mxu0
        %v862 = vadd.f32 0.0, %v861
        %863 = vdwg.mxu0
        %864 = vmatpush.msra.mxu0 0.0
        %865 = vmatpush.msra.mxu0 0.0
        %866 = vmatpush.msra.mxu0 0.0
        %867 = vmatpush.msra.mxu0 0.0
        %868 = vmatpush.msra.mxu0 0.0
        %869 = vmatpush.msra.mxu0 0.0
        %870 = vmatpush.msra.mxu0 %v726
        %871 = vmatpush.msra.mxu0 %v674
        %872 = vmatpush.msra.mxu0 %v656
        %873 = vmatpush.msra.mxu0 %v638
        %874 = vmatpush.msra.mxu0 %v620
        %875 = vmatpush.msra.mxu0 %v602
        %876 = vmatpush.msra.mxu0 %v584
        %877 = vmatpush.msra.mxu0 %v566
        %878 = vmatpush.msra.mxu0 %v548
        %879 = vmatpush.msra.mxu0 %v530
        %880 = vmatmul.f32.gmra.mxu0 %v707
        %v881 = vpop.f32.mrf.mxu0
        %v882 = vadd.f32 0.0, %v881
        %883 = vdwg.mxu0
        %884 = vmatpush.msra.mxu0 0.0
        %885 = vmatpush.msra.mxu0 0.0
        %886 = vmatpush.msra.mxu0 0.0
        %887 = vmatpush.msra.mxu0 0.0
        %888 = vmatpush.msra.mxu0 0.0
        %889 = vmatpush.msra.mxu0 0.0
        %890 = vmatpush.msra.mxu0 %v729
        %891 = vmatpush.msra.mxu0 %v675
        %892 = vmatpush.msra.mxu0 %v657
        %893 = vmatpush.msra.mxu0 %v639
        %894 = vmatpush.msra.mxu0 %v621
        %895 = vmatpush.msra.mxu0 %v603
        %896 = vmatpush.msra.mxu0 %v585
        %897 = vmatpush.msra.mxu0 %v567
        %898 = vmatpush.msra.mxu0 %v549
        %899 = vmatpush.msra.mxu0 %v531
        %900 = vmatmul.f32.gmra.mxu0 %v707
        %v901 = vpop.f32.mrf.mxu0
        %v902 = vadd.f32 0.0, %v901
        %903 = vdwg.mxu0
        %904 = vmatpush.msra.mxu0 0.0
        %905 = vmatpush.msra.mxu0 0.0
        %906 = vmatpush.msra.mxu0 0.0
        %907 = vmatpush.msra.mxu0 0.0
        %908 = vmatpush.msra.mxu0 0.0
        %909 = vmatpush.msra.mxu0 0.0
        %910 = vmatpush.msra.mxu0 %v732
        %911 = vmatpush.msra.mxu0 %v676
        %912 = vmatpush.msra.mxu0 %v658
        %913 = vmatpush.msra.mxu0 %v640
        %914 = vmatpush.msra.mxu0 %v622
        %915 = vmatpush.msra.mxu0 %v604
        %916 = vmatpush.msra.mxu0 %v586
        %917 = vmatpush.msra.mxu0 %v568
        %918 = vmatpush.msra.mxu0 %v550
        %919 = vmatpush.msra.mxu0 %v532
        %920 = vmatmul.f32.gmra.mxu0 %v707
        %v921 = vpop.f32.mrf.mxu0
        %v922 = vadd.f32 0.0, %v921
        %923 = vdwg.mxu0
        %924 = vmatpush.msra.mxu0 0.0
        %925 = vmatpush.msra.mxu0 0.0
        %926 = vmatpush.msra.mxu0 0.0
        %927 = vmatpush.msra.mxu0 0.0
        %928 = vmatpush.msra.mxu0 0.0
        %929 = vmatpush.msra.mxu0 0.0
        %930 = vmatpush.msra.mxu0 %v735
        %931 = vmatpush.msra.mxu0 %v677
        %932 = vmatpush.msra.mxu0 %v659
        %933 = vmatpush.msra.mxu0 %v641
        %934 = vmatpush.msra.mxu0 %v623
        %935 = vmatpush.msra.mxu0 %v605
        %936 = vmatpush.msra.mxu0 %v587
        %937 = vmatpush.msra.mxu0 %v569
        %938 = vmatpush.msra.mxu0 %v551
        %939 = vmatpush.msra.mxu0 %v533
        %940 = vmatmul.f32.gmra.mxu0 %v707
        %v941 = vpop.f32.mrf.mxu0
        %v942 = vadd.f32 0.0, %v941
        %943 = vdwg.mxu0
        %944 = vmatpush.msra.mxu0 0.0
        %945 = vmatpush.msra.mxu0 0.0
        %946 = vmatpush.msra.mxu0 0.0
        %947 = vmatpush.msra.mxu0 0.0
        %948 = vmatpush.msra.mxu0 0.0
        %949 = vmatpush.msra.mxu0 0.0
        %950 = vmatpush.msra.mxu0 %v738
        %951 = vmatpush.msra.mxu0 %v678
        %952 = vmatpush.msra.mxu0 %v660
        %953 = vmatpush.msra.mxu0 %v642
        %954 = vmatpush.msra.mxu0 %v624
        %955 = vmatpush.msra.mxu0 %v606
        %956 = vmatpush.msra.mxu0 %v588
        %957 = vmatpush.msra.mxu0 %v570
        %958 = vmatpush.msra.mxu0 %v552
        %959 = vmatpush.msra.mxu0 %v534
        %960 = vmatmul.f32.gmra.mxu0 %v707
        %v961 = vpop.f32.mrf.mxu0
        %v962 = vadd.f32 0.0, %v961
        %963 = vdwg.mxu0
        %964 = vmatpush.msra.mxu0 0.0
        %965 = vmatpush.msra.mxu0 0.0
        %966 = vmatpush.msra.mxu0 0.0
        %967 = vmatpush.msra.mxu0 0.0
        %968 = vmatpush.msra.mxu0 0.0
        %969 = vmatpush.msra.mxu0 0.0
        %970 = vmatpush.msra.mxu0 %v741
        %971 = vmatpush.msra.mxu0 %v679
        %972 = vmatpush.msra.mxu0 %v661
        %973 = vmatpush.msra.mxu0 %v643
        %974 = vmatpush.msra.mxu0 %v625
        %975 = vmatpush.msra.mxu0 %v607
        %976 = vmatpush.msra.mxu0 %v589
        %977 = vmatpush.msra.mxu0 %v571
        %978 = vmatpush.msra.mxu0 %v553
        %979 = vmatpush.msra.mxu0 %v535
        %980 = vmatmul.f32.gmra.mxu0 %v707
        %v981 = vpop.f32.mrf.mxu0
        %v982 = vadd.f32 0.0, %v981
        %983 = vdwg.mxu0
        %984 = vmatpush.msra.mxu0 0.0
        %985 = vmatpush.msra.mxu0 0.0
        %986 = vmatpush.msra.mxu0 0.0
        %987 = vmatpush.msra.mxu0 0.0
        %988 = vmatpush.msra.mxu0 0.0
        %989 = vmatpush.msra.mxu0 0.0
        %990 = vmatpush.msra.mxu0 %v744
        %991 = vmatpush.msra.mxu0 %v680
        %992 = vmatpush.msra.mxu0 %v662
        %993 = vmatpush.msra.mxu0 %v644
        %994 = vmatpush.msra.mxu0 %v626
        %995 = vmatpush.msra.mxu0 %v608
        %996 = vmatpush.msra.mxu0 %v590
        %997 = vmatpush.msra.mxu0 %v572
        %998 = vmatpush.msra.mxu0 %v554
        %999 = vmatpush.msra.mxu0 %v536
        %1000 = vmatmul.f32.gmra.mxu0 %v707
        %v1001 = vpop.f32.mrf.mxu0
        %v1002 = vadd.f32 0.0, %v1001
        %1003 = vdwg.mxu0
        %1004 = vmatpush.msra.mxu0 0.0
        %1005 = vmatpush.msra.mxu0 0.0
        %1006 = vmatpush.msra.mxu0 0.0
        %1007 = vmatpush.msra.mxu0 0.0
        %1008 = vmatpush.msra.mxu0 0.0
        %1009 = vmatpush.msra.mxu0 0.0
        %1010 = vmatpush.msra.mxu0 %v747
        %1011 = vmatpush.msra.mxu0 %v681
        %1012 = vmatpush.msra.mxu0 %v663
        %1013 = vmatpush.msra.mxu0 %v645
        %1014 = vmatpush.msra.mxu0 %v627
        %1015 = vmatpush.msra.mxu0 %v609
        %1016 = vmatpush.msra.mxu0 %v591
        %1017 = vmatpush.msra.mxu0 %v573
        %1018 = vmatpush.msra.mxu0 %v555
        %1019 = vmatpush.msra.mxu0 %v537
        %1020 = vmatmul.f32.gmra.mxu0 %v707
        %v1021 = vpop.f32.mrf.mxu0
        %v1022 = vadd.f32 0.0, %v1021
        %1023 = vdwg.mxu0
        %1024 = vmatpush.msra.mxu0 0.0
        %1025 = vmatpush.msra.mxu0 0.0
        %1026 = vmatpush.msra.mxu0 0.0
        %1027 = vmatpush.msra.mxu0 0.0
        %1028 = vmatpush.msra.mxu0 0.0
        %1029 = vmatpush.msra.mxu0 0.0
        %1030 = vmatpush.msra.mxu0 %v750
        %1031 = vmatpush.msra.mxu0 %v682
        %1032 = vmatpush.msra.mxu0 %v664
        %1033 = vmatpush.msra.mxu0 %v646
        %1034 = vmatpush.msra.mxu0 %v628
        %1035 = vmatpush.msra.mxu0 %v610
        %1036 = vmatpush.msra.mxu0 %v592
        %1037 = vmatpush.msra.mxu0 %v574
        %1038 = vmatpush.msra.mxu0 %v556
        %1039 = vmatpush.msra.mxu0 %v538
        %1040 = vmatmul.f32.gmra.mxu0 %v707
        %v1041 = vpop.f32.mrf.mxu0
        %v1042 = vadd.f32 0.0, %v1041
        %1043 = vdwg.mxu0
        %1044 = vmatpush.msra.mxu0 0.0
        %1045 = vmatpush.msra.mxu0 0.0
        %1046 = vmatpush.msra.mxu0 0.0
        %1047 = vmatpush.msra.mxu0 0.0
        %1048 = vmatpush.msra.mxu0 0.0
        %1049 = vmatpush.msra.mxu0 0.0
        %1050 = vmatpush.msra.mxu0 %v753
        %1051 = vmatpush.msra.mxu0 %v683
        %1052 = vmatpush.msra.mxu0 %v665
        %1053 = vmatpush.msra.mxu0 %v647
        %1054 = vmatpush.msra.mxu0 %v629
        %1055 = vmatpush.msra.mxu0 %v611
        %1056 = vmatpush.msra.mxu0 %v593
        %1057 = vmatpush.msra.mxu0 %v575
        %1058 = vmatpush.msra.mxu0 %v557
        %1059 = vmatpush.msra.mxu0 %v539
        %1060 = vmatmul.f32.gmra.mxu0 %v707
        %v1061 = vpop.f32.mrf.mxu0
        %v1062 = vadd.f32 0.0, %v1061
        %1063 = vdwg.mxu0
        %1064 = vmatpush.msra.mxu0 0.0
        %1065 = vmatpush.msra.mxu0 0.0
        %1066 = vmatpush.msra.mxu0 0.0
        %1067 = vmatpush.msra.mxu0 0.0
        %1068 = vmatpush.msra.mxu0 0.0
        %1069 = vmatpush.msra.mxu0 0.0
        %1070 = vmatpush.msra.mxu0 %v756
        %1071 = vmatpush.msra.mxu0 %v684
        %1072 = vmatpush.msra.mxu0 %v666
        %1073 = vmatpush.msra.mxu0 %v648
        %1074 = vmatpush.msra.mxu0 %v630
        %1075 = vmatpush.msra.mxu0 %v612
        %1076 = vmatpush.msra.mxu0 %v594
        %1077 = vmatpush.msra.mxu0 %v576
        %1078 = vmatpush.msra.mxu0 %v558
        %1079 = vmatpush.msra.mxu0 %v540
        %1080 = vmatmul.f32.gmra.mxu0 %v707
        %v1081 = vpop.f32.mrf.mxu0
        %v1082 = vadd.f32 0.0, %v1081
        %1083 = vdwg.mxu0
        %1084 = vmatpush.msra.mxu0 0.0
        %1085 = vmatpush.msra.mxu0 0.0
        %1086 = vmatpush.msra.mxu0 0.0
        %1087 = vmatpush.msra.mxu0 0.0
        %1088 = vmatpush.msra.mxu0 0.0
        %1089 = vmatpush.msra.mxu0 0.0
        %1090 = vmatpush.msra.mxu0 %v759
        %1091 = vmatpush.msra.mxu0 %v685
        %1092 = vmatpush.msra.mxu0 %v667
        %1093 = vmatpush.msra.mxu0 %v649
        %1094 = vmatpush.msra.mxu0 %v631
        %1095 = vmatpush.msra.mxu0 %v613
        %1096 = vmatpush.msra.mxu0 %v595
        %1097 = vmatpush.msra.mxu0 %v577
        %1098 = vmatpush.msra.mxu0 %v559
        %1099 = vmatpush.msra.mxu0 %v541
        %1100 = vmatmul.f32.gmra.mxu0 %v707
        %v1101 = vpop.f32.mrf.mxu0
        %v1102 = vadd.f32 0.0, %v1101
        %1103 = vdwg.mxu0
        %1104 = vmatpush.msra.mxu0 0.0
        %1105 = vmatpush.msra.mxu0 0.0
        %1106 = vmatpush.msra.mxu0 0.0
        %1107 = vmatpush.msra.mxu0 0.0
        %1108 = vmatpush.msra.mxu0 0.0
        %1109 = vmatpush.msra.mxu0 0.0
        %1110 = vmatpush.msra.mxu0 %v762
        %1111 = vmatpush.msra.mxu0 %v686
        %1112 = vmatpush.msra.mxu0 %v668
        %1113 = vmatpush.msra.mxu0 %v650
        %1114 = vmatpush.msra.mxu0 %v632
        %1115 = vmatpush.msra.mxu0 %v614
        %1116 = vmatpush.msra.mxu0 %v596
        %1117 = vmatpush.msra.mxu0 %v578
        %1118 = vmatpush.msra.mxu0 %v560
        %1119 = vmatpush.msra.mxu0 %v542
        %1120 = vmatmul.f32.gmra.mxu0 %v707
        %v1121 = vpop.f32.mrf.mxu0
        %v1122 = vadd.f32 0.0, %v1121
        %1123 = vdwg.mxu0
        %vm1124 = vcmp.ge.f32.partialorder %v782, 0.0
        %vm1125 = vcmp.ge.f32.partialorder %v802, 0.0
        %vm1126 = vcmp.ge.f32.partialorder %v822, 0.0
        %vm1127 = vcmp.ge.f32.partialorder %v842, 0.0
        %vm1128 = vcmp.ge.f32.partialorder %v862, 0.0
        %vm1129 = vcmp.ge.f32.partialorder %v882, 0.0
        %vm1130 = vcmp.ge.f32.partialorder %v902, 0.0
        %vm1131 = vcmp.ge.f32.partialorder %v922, 0.0
        %vm1132 = vcmp.ge.f32.partialorder %v942, 0.0
        %vm1133 = vcmp.ge.f32.partialorder %v962, 0.0
        %vm1134 = vcmp.ge.f32.partialorder %v982, 0.0
        %vm1135 = vcmp.ge.f32.partialorder %v1002, 0.0
        %vm1136 = vcmp.ge.f32.partialorder %v1022, 0.0
        %vm1137 = vcmp.ge.f32.partialorder %v1042, 0.0
        %vm1138 = vcmp.ge.f32.partialorder %v1062, 0.0
        %vm1139 = vcmp.ge.f32.partialorder %v1082, 0.0
        %vm1140 = vcmp.ge.f32.partialorder %v1102, 0.0
        %vm1141 = vcmp.ge.f32.partialorder %v1122, 0.0
        %v1142 = vmul.f32 %v782, 0.01
        %v1143 = vmul.f32 %v802, 0.01
        %v1144 = vmul.f32 %v822, 0.01
        %v1145 = vmul.f32 %v842, 0.01
        %v1146 = vmul.f32 %v862, 0.01
        %v1147 = vmul.f32 %v882, 0.01
        %v1148 = vmul.f32 %v902, 0.01
        %v1149 = vmul.f32 %v922, 0.01
        %v1150 = vmul.f32 %v942, 0.01
        %v1151 = vmul.f32 %v962, 0.01
        %v1152 = vmul.f32 %v982, 0.01
        %v1153 = vmul.f32 %v1002, 0.01
        %v1154 = vmul.f32 %v1022, 0.01
        %v1155 = vmul.f32 %v1042, 0.01
        %v1156 = vmul.f32 %v1062, 0.01
        %v1157 = vmul.f32 %v1082, 0.01
        %v1158 = vmul.f32 %v1102, 0.01
        %v1159 = vmul.f32 %v1122, 0.01
        %v1160 = vsel %vm1124, %v782, %v1142
        %v1161 = vsel %vm1125, %v802, %v1143
        %v1162 = vsel %vm1126, %v822, %v1144
        %v1163 = vsel %vm1127, %v842, %v1145
        %v1164 = vsel %vm1128, %v862, %v1146
        %v1165 = vsel %vm1129, %v882, %v1147
        %v1166 = vsel %vm1130, %v902, %v1148
        %v1167 = vsel %vm1131, %v922, %v1149
        %v1168 = vsel %vm1132, %v942, %v1150
        %v1169 = vsel %vm1133, %v962, %v1151
        %v1170 = vsel %vm1134, %v982, %v1152
        %v1171 = vsel %vm1135, %v1002, %v1153
        %v1172 = vsel %vm1136, %v1022, %v1154
        %v1173 = vsel %vm1137, %v1042, %v1155
        %v1174 = vsel %vm1138, %v1062, %v1156
        %v1175 = vsel %vm1139, %v1082, %v1157
        %v1176 = vsel %vm1140, %v1102, %v1158
        %v1177 = vsel %vm1141, %v1122, %v1159
        %1178 = vst [vmem:[%s522] sm:$0xff] %v1160
        %1179 = vst [vmem:[%s522 + $0x8] sm:$0xff] %v1161
        %1180 = vst [vmem:[%s522 + $0x10] sm:$0xff] %v1162
        %1181 = vst [vmem:[%s522 + $0x18] sm:$0xff] %v1163
        %1182 = vst [vmem:[%s522 + $0x20] sm:$0xff] %v1164
        %1183 = vst [vmem:[%s522 + $0x28] sm:$0xff] %v1165
        %1184 = vst [vmem:[%s522 + $0x30] sm:$0xff] %v1166
        %1185 = vst [vmem:[%s522 + $0x38] sm:$0xff] %v1167
        %1186 = vst [vmem:[%s522 + $0x40] sm:$0xff] %v1168
        %1187 = vst [vmem:[%s522 + $0x48] sm:$0xff] %v1169
        %1188 = vst [vmem:[%s522 + $0x50] sm:$0xff] %v1170
        %1189 = vst [vmem:[%s522 + $0x58] sm:$0xff] %v1171
        %1190 = vst [vmem:[%s522 + $0x60] sm:$0xff] %v1172
        %1191 = vst [vmem:[%s522 + $0x68] sm:$0xff] %v1173
        %1192 = vst [vmem:[%s522 + $0x70] sm:$0xff] %v1174
        %1193 = vst [vmem:[%s522 + $0x78] sm:$0xff] %v1175
        %1194 = vst [vmem:[%s522 + $0x80] sm:$0xff] %v1176
        %1195 = vst [vmem:[%s522 + $0x88] sm:$0xff] %v1177
        %s1196 = smul.u32 18, %s13
        %p1197 = scmp.lt.s32.totalorder %s1196, 35
        %s1198 = scalar_select %p1197, %s1196, 35
        %s1199 = smul.addr %s1198, 8
        %s1200 = scalar_lea.vmem %s2, %s1199
        // Predicated region
        $region52: #{conv_block2_forward.7} parent=46 // pred_check
          %p1201 = pneg %p78
        $region53: #{conv_block2_forward.7} parent=46 // pred_check_branch
          %1203 = sbr.rel (%p1201) target = $region55
        $region54: #{conv_block2_forward.7} parent=46 // pred_region
          %s1204 = smul.u32 18, %s13
        $region55: #{conv_block2_forward.7} parent=46 // pred_fallthru
          _
      $region47: #{conv_block2_forward.7} parent=5 // pred_fallthru
        _
      %p1205 = scmp.le.s32.totalorder 2, %s8
      // Predicated region
      $region56: #{conv_block2_forward.7} parent=5 // pred_check
        %p1206 = pneg %p1205
      $region57: #{conv_block2_forward.7} parent=5 // pred_check_branch
        %1208 = sbr.rel (%p1206) target = $region59
      $region58: #{conv_block2_forward.7} parent=5 // pred_region
        %s1209 = ssub.s32 %s8, 2
        // Predicated region
        $region60: #{conv_block2_forward.7} parent=58 // pred_check
          %p1210 = pneg %p84
        $region61: #{conv_block2_forward.7} parent=58 // pred_check_branch
          %1212 = sbr.rel (%p1210) target = $region63
        $region62: #{conv_block2_forward.7} parent=58 // pred_region
          %s1213 = smul.u32 18, %s14
          %p1214 = scmp.lt.s32.totalorder %s1213, 35
          %s1215 = scalar_select %p1214, %s1213, 35
          %s1216 = smul.addr %s1215, 8
          %s1217 = scalar_lea.vmem %s2, %s1216
        $region63: #{conv_block2_forward.7} parent=58 // pred_fallthru
          _
      $region59: #{conv_block2_forward.7} parent=5 // pred_fallthru
        _
    $region6: #{conv_block2_forward.7} parent=1 // loop_footer
      %s12 = sadd.s32 1, %s8
    $region7: #{conv_block2_forward.7} parent=1 // loop_footer_branch
      %7 = sbr.rel target = $region3
    $region8: #{conv_block2_forward.7} parent=1 // loop_exit
      _

</llo_original>
